<compile_context>
chip_gen: v6e
topology: v6e:2x2x1
jax: 0.10.0
libtpu: 0.0.40
codegen_flags: <defaults>
</compile_context>

<pallas_src>
import jax
import jax.numpy as jnp
from jax.experimental import pallas as pl
from jax.experimental.pallas import tpu as pltpu


def _erf(x):
    # Abramowitz & Stegun 7.1.26 rational approximation; max abs err ~1.5e-7,
    # i.e. exact at f32 resolution (PyTorch F.gelu uses the exact erf form).
    a1, a2, a3, a4, a5 = 0.254829592, -0.284496736, 1.421413741, -1.453152027, 1.061405429
    p = 0.3275911
    sgn = jnp.where(x >= 0.0, 1.0, -1.0)
    ax = jnp.abs(x)
    t = 1.0 / (1.0 + p * ax)
    poly = ((((a5 * t + a4) * t + a3) * t + a2) * t + a1) * t
    return sgn * (1.0 - poly * jnp.exp(-ax * ax))


def _gelu_exact(x):
    return 0.5 * x * (1.0 + _erf(x * 0.7071067811865476))


def transform_kernel(x_ref, w1_ref, b1_ref, gamma_ref, beta_ref, h_ref):
    # BertPredictionHeadTransform: dense (PyTorch (out,in) weight, contract dim1 vs
    # dim1) -> fused bias_gelu -> LayerNorm(eps=1e-12).  One grid axis over row tiles
    # of masked tokens; edge blocks are masked on store by Pallas.
    x = x_ref[...]                                                   # [tm, H] f32
    h = jax.lax.dot_general(
        x, w1_ref[...],
        dimension_numbers=(((1,), (1,)), ((), ())),
        preferred_element_type=jnp.float32)
    h = h + b1_ref[...]                                              # fused bias_gelu
    h = _gelu_exact(h)
    mu = jnp.mean(h, axis=-1, keepdims=True)
    var = jnp.mean((h - mu) ** 2, axis=-1, keepdims=True)
    h = (h - mu) * jax.lax.rsqrt(var + 1e-12)                        # LayerNorm eps=1e-12
    h = h * gamma_ref[...] + beta_ref[...]
    h_ref[...] = h.astype(h_ref.dtype)                               # bf16 h (tiny array)


def decoder_kernel(h_ref, emb_ref, out_ref):
    # Tied-embedding decoder, no bias on the sparse_mask_prediction path:
    # [tm, H] contract [tv, H] on H  ->  [tm, tv]; f32 MXU accumulation, bf16 store.
    out_ref[...] = jax.lax.dot_general(
        h_ref[...], emb_ref[...],
        dimension_numbers=(((1,), (1,)), ((), ())),
        preferred_element_type=jnp.float32).astype(out_ref.dtype)


def _round_up(x, m):
    return (x + m - 1) // m * m


def bert_only_mlm_head(sequence_output, masked_token_indexes, params,
                       *, tm=512, tv=2048, out_dtype=jnp.bfloat16):
    H = sequence_output.shape[-1]
    V = params["emb"].shape[0]

    # sparse_mask_prediction=True: gather masked rows first (glue, plain JAX).
    x = sequence_output.reshape(-1, H)[masked_token_indexes].astype(jnp.float32)
    M = x.shape[0]

    # Clamp tiles for small problems (still (8,128)-aligned block shapes); Pallas
    # masks the ragged edge blocks, so no padding and no final slice are needed.
    tm = min(tm, _round_up(M, 8))
    tv = min(tv, _round_up(V, 128))

    w1 = params["w1"].astype(jnp.float32)                 # [H, H] (out, in), no transpose
    b1 = params["b1"].reshape(1, H).astype(jnp.float32)
    gamma = params["gamma"].reshape(1, H).astype(jnp.float32)
    beta = params["beta"].reshape(1, H).astype(jnp.float32)

    emb = params["emb"]
    if emb.dtype != jnp.bfloat16:
        # TODO(synk): in a training loop, cast/cache the bf16 embedding table once
        # outside the step instead of re-casting the full V x H table every call.
        emb = emb.astype(jnp.bfloat16)

    # Stage 1: transform (dense + bias_gelu + LayerNorm) over masked-token rows.
    h = pl.pallas_call(
        transform_kernel,
        out_shape=jax.ShapeDtypeStruct((M, H), jnp.bfloat16),
        grid_spec=pltpu.PrefetchScalarGridSpec(
            num_scalar_prefetch=0,
            grid=(pl.cdiv(M, tm),),
            in_specs=[
                pl.BlockSpec((tm, H), lambda i: (i, 0)),   # x row tile
                pl.BlockSpec((H, H), lambda i: (0, 0)),    # W1 (resident)
                pl.BlockSpec((1, H), lambda i: (0, 0)),    # b1
                pl.BlockSpec((1, H), lambda i: (0, 0)),    # LN gamma
                pl.BlockSpec((1, H), lambda i: (0, 0)),    # LN beta
            ],
            out_specs=pl.BlockSpec((tm, H), lambda i: (i, 0)),
        ),
        compiler_params=pltpu.CompilerParams(
            dimension_semantics=("parallel",),
            vmem_limit_bytes=32 * 1024 * 1024),
    )(x, w1, b1, gamma, beta)

    # Stage 2: decoder — pure h x E^T tiling, both axes parallel (megacore-friendly).
    out = pl.pallas_call(
        decoder_kernel,
        out_shape=jax.ShapeDtypeStruct((M, V), out_dtype),
        grid_spec=pltpu.PrefetchScalarGridSpec(
            num_scalar_prefetch=0,
            grid=(pl.cdiv(M, tm), pl.cdiv(V, tv)),
            in_specs=[
                pl.BlockSpec((tm, H), lambda i, j: (i, 0)),   # h row tile (bf16)
                pl.BlockSpec((tv, H), lambda i, j: (j, 0)),   # embedding vocab tile (bf16)
            ],
            out_specs=pl.BlockSpec((tm, tv), lambda i, j: (i, j)),
        ),
        compiler_params=pltpu.CompilerParams(
            dimension_semantics=("parallel", "parallel"),
            vmem_limit_bytes=32 * 1024 * 1024),
    )(h, emb)

    return out


def reference(sequence_output, masked_token_indexes, params):
    H = sequence_output.shape[-1]
    x = sequence_output.reshape(-1, H)[masked_token_indexes].astype(jnp.float32)
    h = x @ params["w1"].T + params["b1"]
    h = jax.nn.gelu(h, approximate=False)
    mu = jnp.mean(h, axis=-1, keepdims=True)
    var = jnp.mean((h - mu) ** 2, axis=-1, keepdims=True)
    h = (h - mu) / jnp.sqrt(var + 1e-12) * params["gamma"] + params["beta"]
    return h @ params["emb"].T


if __name__ == "__main__":
    B, S, H, V = 2, 128, 128, 2000
    M = 200  # number of masked tokens (not a tile multiple -> exercises ragged edges)

    key = jax.random.PRNGKey(0)
    k_seq, k_w1, k_b1, k_emb, k_idx = jax.random.split(key, 5)

    sequence_output = jax.random.normal(k_seq, (B, S, H), dtype=jnp.float32)
    masked_token_indexes = jnp.sort(
        jax.random.permutation(k_idx, B * S)[:M]).astype(jnp.int32)

    params = {
        # BertPredictionHeadTransform dense (hidden -> hidden), PyTorch (out,in) layout
        "w1": 0.02 * jax.random.normal(k_w1, (H, H), dtype=jnp.float32),
        "b1": 0.02 * jax.random.normal(k_b1, (H,), dtype=jnp.float32),
        # LayerNorm affine params
        "gamma": jnp.ones((H,), dtype=jnp.float32),
        "beta": jnp.zeros((H,), dtype=jnp.float32),
        # Tied embedding table used by the (bias-free, sparse-predict) decoder
        "emb": 0.02 * jax.random.normal(k_emb, (V, H), dtype=jnp.float32),
        # TODO(synk): self.bias [V] exists in the module but is unused on the
        # sparse_mask_prediction=True forward path, so it is omitted here.
    }

    out = bert_only_mlm_head(sequence_output, masked_token_indexes, params)
    out = jax.block_until_ready(out)

    ref = reference(sequence_output, masked_token_indexes, params)
    assert out.shape == (M, V)
    assert out.dtype == jnp.bfloat16
    out_f32 = out.astype(jnp.float32)
    assert bool(jnp.all(jnp.isfinite(out_f32)))
    assert bool(jnp.allclose(out_f32, ref, rtol=2e-2, atol=2e-2))
    print("KERNEL_OK")
</pallas_src>

<mosaic_0001>
module attributes {stable_mosaic.version = 11 : i64} {
  func.func @transform_kernel(%arg0: i32, %arg1: memref<200x128xf32, #tpu.memory_space<vmem>>, %arg2: memref<128x128xf32, #tpu.memory_space<vmem>>, %arg3: memref<1x128xf32, #tpu.memory_space<vmem>>, %arg4: memref<1x128xf32, #tpu.memory_space<vmem>>, %arg5: memref<1x128xf32, #tpu.memory_space<vmem>>, %arg6: memref<200x128xbf16, #tpu.memory_space<vmem>>) attributes {dimension_semantics = [#tpu.dimension_semantics<parallel>], iteration_bounds = array<i64: 1>, scalar_prefetch = 0 : i64, scratch_operands = 0 : i64, tpu.core_type = #tpu.core_type<tc>, window_params = [{transform_indices = @transform_0, window_bounds = array<i64: 200, 128>}, {pipeline_mode = #tpu.pipeline_mode<synchronous>, transform_indices = @transform_1, window_bounds = array<i64: 128, 128>}, {pipeline_mode = #tpu.pipeline_mode<synchronous>, transform_indices = @transform_2, window_bounds = array<i64: 1, 128>}, {pipeline_mode = #tpu.pipeline_mode<synchronous>, transform_indices = @transform_3, window_bounds = array<i64: 1, 128>}, {pipeline_mode = #tpu.pipeline_mode<synchronous>, transform_indices = @transform_4, window_bounds = array<i64: 1, 128>}, {transform_indices = @transform_5, window_bounds = array<i64: 200, 128>}]} {
    %c0 = arith.constant 0 : index
    %c0_0 = arith.constant 0 : index
    %0 = vector.load %arg1[%c0, %c0_0] : memref<200x128xf32, #tpu.memory_space<vmem>>, vector<200x128xf32>
    %c0_1 = arith.constant 0 : index
    %c0_2 = arith.constant 0 : index
    %1 = vector.load %arg2[%c0_1, %c0_2] : memref<128x128xf32, #tpu.memory_space<vmem>>, vector<128x128xf32>
    %cst = arith.constant dense<0.000000e+00> : vector<200x128xf32>
    %2 = tpu.matmul %0, %1, %cst {dimension_numbers = #tpu.dot_dimension_numbers<[1], [1], [0], [0], [0, 0, 1, 0], [], []>} : vector<200x128xf32>, vector<128x128xf32>, vector<200x128xf32> -> vector<200x128xf32>
    %c0_3 = arith.constant 0 : index
    %c0_4 = arith.constant 0 : index
    %3 = vector.load %arg3[%c0_3, %c0_4] : memref<1x128xf32, #tpu.memory_space<vmem>>, vector<1x128xf32>
    %4 = vector.broadcast %3 : vector<1x128xf32> to vector<200x128xf32>
    %5 = arith.addf %2, %4 : vector<200x128xf32>
    %cst_5 = arith.constant 5.000000e-01 : f32
    %6 = vector.broadcast %cst_5 : f32 to vector<200x128xf32>
    %7 = arith.mulf %6, %5 : vector<200x128xf32>
    %cst_6 = arith.constant 0.707106769 : f32
    %8 = vector.broadcast %cst_6 : f32 to vector<200x128xf32>
    %9 = arith.mulf %5, %8 : vector<200x128xf32>
    %cst_7 = arith.constant 0.000000e+00 : f32
    %10 = vector.broadcast %cst_7 : f32 to vector<200x128xf32>
    %11 = arith.cmpf oge, %9, %10 : vector<200x128xf32>
    %cst_8 = arith.constant 1.000000e+00 : f32
    %cst_9 = arith.constant -1.000000e+00 : f32
    %12 = vector.broadcast %cst_8 : f32 to vector<200x128xf32>
    %13 = vector.broadcast %cst_9 : f32 to vector<200x128xf32>
    %14 = arith.select %11, %12, %13 : vector<200x128xi1>, vector<200x128xf32>
    %15 = math.absf %9 : vector<200x128xf32>
    %cst_10 = arith.constant 0.327591091 : f32
    %16 = vector.broadcast %cst_10 : f32 to vector<200x128xf32>
    %17 = arith.mulf %16, %15 : vector<200x128xf32>
    %cst_11 = arith.constant 1.000000e+00 : f32
    %18 = vector.broadcast %cst_11 : f32 to vector<200x128xf32>
    %19 = arith.addf %18, %17 : vector<200x128xf32>
    %cst_12 = arith.constant 1.000000e+00 : f32
    %20 = vector.broadcast %cst_12 : f32 to vector<200x128xf32>
    %21 = arith.divf %20, %19 : vector<200x128xf32>
    %cst_13 = arith.constant 1.06140542 : f32
    %22 = vector.broadcast %cst_13 : f32 to vector<200x128xf32>
    %23 = arith.mulf %22, %21 : vector<200x128xf32>
    %cst_14 = arith.constant -1.45315206 : f32
    %24 = vector.broadcast %cst_14 : f32 to vector<200x128xf32>
    %25 = arith.addf %23, %24 : vector<200x128xf32>
    %26 = arith.mulf %25, %21 : vector<200x128xf32>
    %cst_15 = arith.constant 1.42141378 : f32
    %27 = vector.broadcast %cst_15 : f32 to vector<200x128xf32>
    %28 = arith.addf %26, %27 : vector<200x128xf32>
    %29 = arith.mulf %28, %21 : vector<200x128xf32>
    %cst_16 = arith.constant -0.284496725 : f32
    %30 = vector.broadcast %cst_16 : f32 to vector<200x128xf32>
    %31 = arith.addf %29, %30 : vector<200x128xf32>
    %32 = arith.mulf %31, %21 : vector<200x128xf32>
    %cst_17 = arith.constant 0.254829586 : f32
    %33 = vector.broadcast %cst_17 : f32 to vector<200x128xf32>
    %34 = arith.addf %32, %33 : vector<200x128xf32>
    %35 = arith.mulf %34, %21 : vector<200x128xf32>
    %cst_18 = arith.constant 0.000000e+00 : f32
    %36 = vector.broadcast %cst_18 : f32 to vector<200x128xf32>
    %37 = arith.subf %36, %15 : vector<200x128xf32>
    %38 = arith.mulf %37, %15 : vector<200x128xf32>
    %39 = math.exp %38 : vector<200x128xf32>
    %40 = arith.mulf %35, %39 : vector<200x128xf32>
    %cst_19 = arith.constant 1.000000e+00 : f32
    %41 = vector.broadcast %cst_19 : f32 to vector<200x128xf32>
    %42 = arith.subf %41, %40 : vector<200x128xf32>
    %43 = arith.mulf %14, %42 : vector<200x128xf32>
    %cst_20 = arith.constant 1.000000e+00 : f32
    %44 = vector.broadcast %cst_20 : f32 to vector<200x128xf32>
    %45 = arith.addf %44, %43 : vector<200x128xf32>
    %46 = arith.mulf %7, %45 : vector<200x128xf32>
    %cst_21 = arith.constant dense<0.000000e+00> : vector<200xf32>
    %47 = vector.multi_reduction <add>, %46, %cst_21 [1] : vector<200x128xf32> to vector<200xf32>
    %48 = vector.shape_cast %47 : vector<200xf32> to vector<200x1xf32>
    %cst_22 = arith.constant 1.280000e+02 : f32
    %49 = vector.broadcast %cst_22 : f32 to vector<200x1xf32>
    %50 = arith.divf %48, %49 : vector<200x1xf32>
    %51 = vector.broadcast %50 : vector<200x1xf32> to vector<200x128xf32>
    %52 = arith.subf %46, %51 : vector<200x128xf32>
    %53 = arith.mulf %52, %52 : vector<200x128xf32>
    %cst_23 = arith.constant dense<0.000000e+00> : vector<200xf32>
    %54 = vector.multi_reduction <add>, %53, %cst_23 [1] : vector<200x128xf32> to vector<200xf32>
    %55 = vector.shape_cast %54 : vector<200xf32> to vector<200x1xf32>
    %cst_24 = arith.constant 1.280000e+02 : f32
    %56 = vector.broadcast %cst_24 : f32 to vector<200x1xf32>
    %57 = arith.divf %55, %56 : vector<200x1xf32>
    %58 = vector.broadcast %50 : vector<200x1xf32> to vector<200x128xf32>
    %59 = arith.subf %46, %58 : vector<200x128xf32>
    %cst_25 = arith.constant 9.99999996E-13 : f32
    %60 = vector.broadcast %cst_25 : f32 to vector<200x1xf32>
    %61 = arith.addf %57, %60 : vector<200x1xf32>
    %62 = math.rsqrt %61 : vector<200x1xf32>
    %63 = vector.broadcast %62 : vector<200x1xf32> to vector<200x128xf32>
    %64 = arith.mulf %59, %63 : vector<200x128xf32>
    %c0_26 = arith.constant 0 : index
    %c0_27 = arith.constant 0 : index
    %65 = vector.load %arg4[%c0_26, %c0_27] : memref<1x128xf32, #tpu.memory_space<vmem>>, vector<1x128xf32>
    %66 = vector.broadcast %65 : vector<1x128xf32> to vector<200x128xf32>
    %67 = arith.mulf %64, %66 : vector<200x128xf32>
    %c0_28 = arith.constant 0 : index
    %c0_29 = arith.constant 0 : index
    %68 = vector.load %arg5[%c0_28, %c0_29] : memref<1x128xf32, #tpu.memory_space<vmem>>, vector<1x128xf32>
    %69 = vector.broadcast %68 : vector<1x128xf32> to vector<200x128xf32>
    %70 = arith.addf %67, %69 : vector<200x128xf32>
    %71 = arith.truncf %70 : vector<200x128xf32> to vector<200x128xbf16>
    %c0_30 = arith.constant 0 : index
    %c0_31 = arith.constant 0 : index
    %72 = vector.load %arg6[%c0_30, %c0_31] : memref<200x128xbf16, #tpu.memory_space<vmem>>, vector<200x128xbf16>
    tpu.vector_store %arg6[%c0_30, %c0_31], %71 {strides = array<i32>} : memref<200x128xbf16, #tpu.memory_space<vmem>>, vector<200x128xbf16>,
    return
  }
  func.func @transform_0(%arg0: i32) -> (i32, i32) {
    %c0_i32 = arith.constant 0 : i32
    %c0_i32_0 = arith.constant 0 : i32
    return %arg0, %c0_i32 : i32, i32
  }
  func.func @transform_1(%arg0: i32) -> (i32, i32) {
    %c0_i32 = arith.constant 0 : i32
    %c0_i32_0 = arith.constant 0 : i32
    %c0_i32_1 = arith.constant 0 : i32
    return %c0_i32, %c0_i32_0 : i32, i32
  }
  func.func @transform_2(%arg0: i32) -> (i32, i32) {
    %c0_i32 = arith.constant 0 : i32
    %c0_i32_0 = arith.constant 0 : i32
    %c0_i32_1 = arith.constant 0 : i32
    return %c0_i32, %c0_i32_0 : i32, i32
  }
  func.func @transform_3(%arg0: i32) -> (i32, i32) {
    %c0_i32 = arith.constant 0 : i32
    %c0_i32_0 = arith.constant 0 : i32
    %c0_i32_1 = arith.constant 0 : i32
    return %c0_i32, %c0_i32_0 : i32, i32
  }
  func.func @transform_4(%arg0: i32) -> (i32, i32) {
    %c0_i32 = arith.constant 0 : i32
    %c0_i32_0 = arith.constant 0 : i32
    %c0_i32_1 = arith.constant 0 : i32
    return %c0_i32, %c0_i32_0 : i32, i32
  }
  func.func @transform_5(%arg0: i32) -> (i32, i32) {
    %c0_i32 = arith.constant 0 : i32
    %c0_i32_0 = arith.constant 0 : i32
    return %arg0, %c0_i32 : i32, i32
  }
}

</mosaic_0001>

<llo_original>
// kernel: tpu_custom_call.1
$region0: #{tpu_custom_call.1}
  #allocation0 [shape = 'u32[]', space=smem, size = 0x4, offset = 0x4, fixed_abs, tag = 'smem constant byte address 0x4 - core index']
  #allocation1 [shape = 'u32[144,128]{1,0:T(1,128)}', space=vmem, size = 0x12000, scoped, tag = 'internal scratch']
  %s0 = inlined_call_operand.hbm [shape: f32[200,128], index: 0, kind: input, shape index: {}]
  %s1 = inlined_call_operand.hbm [shape: f32[128,128], index: 1, kind: input, shape index: {}]
  %s2 = inlined_call_operand.vmem [shape: f32[1,128], index: 2, kind: input, shape index: {}]
  %s3 = inlined_call_operand.vmem [shape: f32[1,128], index: 3, kind: input, shape index: {}]
  %s4 = inlined_call_operand.vmem [shape: f32[1,128], index: 4, kind: input, shape index: {}]
  %s5 = inlined_call_operand.hbm [shape: bf16[200,128], index: 5, kind: output, shape index: {}]
  %s6 = sld [smem:[#allocation0]]
  $region38: #{tpu_custom_call.1} parent=0
    _
  %s8 = ssub.s32 1, %s6
  %s9 = scalar_select 0, %s8, %s6
  $region1: #{tpu_custom_call.1} parent=0
    #allocation2 [shape = 'u8[102400]{0}', space=vmem, size = 0x19000, scoped, tag = 'input window, operand 0, single buffered']
    #allocation3 [shape = 's32[1]{0}', space=sflag, size = 0x4, scoped, tag = 'scoped memory for tpu_custom_call.1']
    #allocation4 [shape = 's32[1]{0}', space=sflag, size = 0x4, scoped, tag = 'scoped memory for tpu_custom_call.1']
    #allocation5 [shape = 'u8[65536]{0}', space=vmem, size = 0x10000, scoped, tag = 'input window, operand 1, single buffered']
    #allocation6 [shape = 's32[1]{0}', space=sflag, size = 0x4, scoped, tag = 'scoped memory for tpu_custom_call.1']
    #allocation7 [shape = 'u8[51200]{0}', space=vmem, size = 0xc800, scoped, tag = 'output window, operand 0, single buffered']
    %10 = vsyncpa [#allocation3], 0
    %11 = vsyncpa [#allocation6], 0
    %12 = vsyncpa [#allocation4], 0
    // Predicated region
    $region2: #{tpu_custom_call.1} parent=1 // pred_check
      _
    $region3: #{tpu_custom_call.1} parent=1 // pred_check_branch
      %14 = sbr.rel (0) target = $region5
    $region4: #{tpu_custom_call.1} parent=1 // pred_region
      %s16 = ssub.s32 3200, 3200
      %17 = vsyncadd [#allocation3], %s16
      %s18 = sshll.u32 [#allocation2], 4
      %s19 = int_to_ptr.vmem [resolvable:$true] %s18
      %24 = dma.hbm_to_vmem [thread:$0]  %s0, 3200, %s19, [#allocation3], 128, 128, 8
    $region5: #{tpu_custom_call.1} parent=1 // pred_fallthru
      _
    // Predicated region
    $region6: #{tpu_custom_call.1} parent=1 // pred_check
      _
    $region7: #{tpu_custom_call.1} parent=1 // pred_check_branch
      %26 = sbr.rel (0) target = $region9
    $region8: #{tpu_custom_call.1} parent=1 // pred_region
      %s28 = ssub.s32 2048, 2048
      %29 = vsyncadd [#allocation6], %s28
      %s30 = sshll.u32 [#allocation5], 4
      %s31 = int_to_ptr.vmem [resolvable:$true] %s30
      %36 = dma.hbm_to_vmem [thread:$0]  %s1, 2048, %s31, [#allocation6], 128, 128, 8
    $region9: #{tpu_custom_call.1} parent=1 // pred_fallthru
      _
    // Predicated region
    $region10: #{tpu_custom_call.1} parent=1 // pred_check
      _
    $region11: #{tpu_custom_call.1} parent=1 // pred_check_branch
      %38 = sbr.rel (0) target = $region13
    $region12: #{tpu_custom_call.1} parent=1 // pred_region
      _
    $region13: #{tpu_custom_call.1} parent=1 // pred_fallthru
      _
    // Predicated region
    $region14: #{tpu_custom_call.1} parent=1 // pred_check
      _
    $region15: #{tpu_custom_call.1} parent=1 // pred_check_branch
      %40 = sbr.rel (0) target = $region17
    $region16: #{tpu_custom_call.1} parent=1 // pred_region
      _
    $region17: #{tpu_custom_call.1} parent=1 // pred_fallthru
      _
    // Predicated region
    $region18: #{tpu_custom_call.1} parent=1 // pred_check
      _
    $region19: #{tpu_custom_call.1} parent=1 // pred_check_branch
      %42 = sbr.rel (0) target = $region21
    $region20: #{tpu_custom_call.1} parent=1 // pred_region
      _
    $region21: #{tpu_custom_call.1} parent=1 // pred_fallthru
      _
    // Predicated region
    $region22: #{tpu_custom_call.1} parent=1 // pred_check
      _
    $region23: #{tpu_custom_call.1} parent=1 // pred_check_branch
      %44 = sbr.rel (0) target = $region25
    $region24: #{tpu_custom_call.1} parent=1 // pred_region
      %45 = dma.done [#allocation3], 3200
    $region25: #{tpu_custom_call.1} parent=1 // pred_fallthru
      _
    // Predicated region
    $region26: #{tpu_custom_call.1} parent=1 // pred_check
      _
    $region27: #{tpu_custom_call.1} parent=1 // pred_check_branch
      %47 = sbr.rel (0) target = $region29
    $region28: #{tpu_custom_call.1} parent=1 // pred_region
      %48 = dma.done [#allocation6], 2048
    $region29: #{tpu_custom_call.1} parent=1 // pred_fallthru
      _
    %v49 = vld [vmem:[#allocation2] sm:$0xff]
    %v50 = vld [vmem:[#allocation2 + $0x8] sm:$0xff]
    %v51 = vld [vmem:[#allocation2 + $0x10] sm:$0xff]
    %v52 = vld [vmem:[#allocation2 + $0x18] sm:$0xff]
    %v53 = vld [vmem:[#allocation2 + $0x20] sm:$0xff]
    %v54 = vld [vmem:[#allocation2 + $0x28] sm:$0xff]
    %v55 = vld [vmem:[#allocation2 + $0x30] sm:$0xff]
    %v56 = vld [vmem:[#allocation2 + $0x38] sm:$0xff]
    %v57 = vld [vmem:[#allocation2 + $0x40] sm:$0xff]
    %v58 = vld [vmem:[#allocation2 + $0x48] sm:$0xff]
    %v59 = vld [vmem:[#allocation2 + $0x50] sm:$0xff]
    %v60 = vld [vmem:[#allocation2 + $0x58] sm:$0xff]
    %v61 = vld [vmem:[#allocation2 + $0x60] sm:$0xff]
    %v62 = vld [vmem:[#allocation2 + $0x68] sm:$0xff]
    %v63 = vld [vmem:[#allocation2 + $0x70] sm:$0xff]
    %v64 = vld [vmem:[#allocation2 + $0x78] sm:$0xff]
    %v65 = vld [vmem:[#allocation2 + $0x80] sm:$0xff]
    %v66 = vld [vmem:[#allocation2 + $0x88] sm:$0xff]
    %v67 = vld [vmem:[#allocation2 + $0x90] sm:$0xff]
    %v68 = vld [vmem:[#allocation2 + $0x98] sm:$0xff]
    %v69 = vld [vmem:[#allocation2 + $0xa0] sm:$0xff]
    %v70 = vld [vmem:[#allocation2 + $0xa8] sm:$0xff]
    %v71 = vld [vmem:[#allocation2 + $0xb0] sm:$0xff]
    %v72 = vld [vmem:[#allocation2 + $0xb8] sm:$0xff]
    %v73 = vld [vmem:[#allocation2 + $0xc0] sm:$0xff]
    %v74 = vld [vmem:[#allocation5] sm:$0xff]
    %v75 = vld [vmem:[#allocation5 + $0x8] sm:$0xff]
    %v76 = vld [vmem:[#allocation5 + $0x10] sm:$0xff]
    %v77 = vld [vmem:[#allocation5 + $0x18] sm:$0xff]
    %v78 = vld [vmem:[#allocation5 + $0x20] sm:$0xff]
    %v79 = vld [vmem:[#allocation5 + $0x28] sm:$0xff]
    %v80 = vld [vmem:[#allocation5 + $0x30] sm:$0xff]
    %v81 = vld [vmem:[#allocation5 + $0x38] sm:$0xff]
    %v82 = vld [vmem:[#allocation5 + $0x40] sm:$0xff]
    %v83 = vld [vmem:[#allocation5 + $0x48] sm:$0xff]
    %v84 = vld [vmem:[#allocation5 + $0x50] sm:$0xff]
    %v85 = vld [vmem:[#allocation5 + $0x58] sm:$0xff]
    %v86 = vld [vmem:[#allocation5 + $0x60] sm:$0xff]
    %v87 = vld [vmem:[#allocation5 + $0x68] sm:$0xff]
    %v88 = vld [vmem:[#allocation5 + $0x70] sm:$0xff]
    %v89 = vld [vmem:[#allocation5 + $0x78] sm:$0xff]
    %v90 = vld [vmem:[%s2] sm:$0x1]
    %v92 = vlaneseq
    %v93 = vshrl.u32 %v92, 7
    %v94 = vsub.s32 0, %v93
    %v95 = vrot.slane %v90, %v94
    %97 = vmatprep.subr.mxu0 0.0
    %98 = vmatpush1.xpose.msra.mxu0 %v89
    %99 = vmatprep.subr.mxu0 0.0
    %100 = vmatpush1.xpose.msra.mxu0 %v88
    %101 = vmatprep.subr.mxu0 0.0
    %102 = vmatpush1.xpose.msra.mxu0 %v87
    %103 = vmatprep.subr.mxu0 0.0
    %104 = vmatpush1.xpose.msra.mxu0 %v86
    %105 = vmatprep.subr.mxu0 0.0
    %106 = vmatpush1.xpose.msra.mxu0 %v85
    %107 = vmatprep.subr.mxu0 0.0
    %108 = vmatpush1.xpose.msra.mxu0 %v84
    %109 = vmatprep.subr.mxu0 0.0
    %110 = vmatpush1.xpose.msra.mxu0 %v83
    %111 = vmatprep.subr.mxu0 0.0
    %112 = vmatpush1.xpose.msra.mxu0 %v82
    %113 = vmatprep.subr.mxu0 0.0
    %114 = vmatpush1.xpose.msra.mxu0 %v81
    %115 = vmatprep.subr.mxu0 0.0
    %116 = vmatpush1.xpose.msra.mxu0 %v80
    %117 = vmatprep.subr.mxu0 0.0
    %118 = vmatpush1.xpose.msra.mxu0 %v79
    %119 = vmatprep.subr.mxu0 0.0
    %120 = vmatpush1.xpose.msra.mxu0 %v78
    %121 = vmatprep.subr.mxu0 0.0
    %122 = vmatpush1.xpose.msra.mxu0 %v77
    %123 = vmatprep.subr.mxu0 0.0
    %124 = vmatpush1.xpose.msra.mxu0 %v76
    %125 = vmatprep.subr.mxu0 0.0
    %126 = vmatpush1.xpose.msra.mxu0 %v75
    %127 = vmatprep.subr.mxu0 0.0
    %128 = vmatpush1.xpose.msra.mxu0 %v74
    %129 = vmatprep.subr.mxu0 0.0
    %130 = vmatpush2.xpose.msra.mxu0 0.0
    %131 = vmatprep.subr.mxu0 0.0
    %132 = vmatpush2.xpose.msra.mxu0 0.0
    %133 = vmatprep.subr.mxu0 0.0
    %134 = vmatpush2.xpose.msra.mxu0 0.0
    %135 = vmatprep.subr.mxu0 0.0
    %136 = vmatpush2.xpose.msra.mxu0 0.0
    %137 = vmatprep.subr.mxu0 0.0
    %138 = vmatpush2.xpose.msra.mxu0 0.0
    %139 = vmatprep.subr.mxu0 0.0
    %140 = vmatpush2.xpose.msra.mxu0 0.0
    %141 = vmatprep.subr.mxu0 0.0
    %142 = vmatpush2.xpose.msra.mxu0 0.0
    %143 = vmatprep.subr.mxu0 0.0
    %144 = vmatpush2.xpose.msra.mxu0 0.0
    %145 = vmatprep.subr.mxu0 0.0
    %146 = vmatpush2.xpose.msra.mxu0 0.0
    %147 = vmatprep.subr.mxu0 0.0
    %148 = vmatpush2.xpose.msra.mxu0 0.0
    %149 = vmatprep.subr.mxu0 0.0
    %150 = vmatpush2.xpose.msra.mxu0 0.0
    %151 = vmatprep.subr.mxu0 0.0
    %152 = vmatpush2.xpose.msra.mxu0 0.0
    %153 = vmatprep.subr.mxu0 0.0
    %154 = vmatpush2.xpose.msra.mxu0 0.0
    %155 = vmatprep.subr.mxu0 0.0
    %156 = vmatpush2.xpose.msra.mxu0 0.0
    %157 = vmatprep.subr.mxu0 0.0
    %158 = vmatpush2.xpose.msra.mxu0 0.0
    %159 = vmatprep.subr.mxu0 0.0
    %160 = vmatpush2.xpose.msra.mxu0 0.0
    %161 = vmatprep.mubr.f32.mxu0 0.0
    %162 = vmatmul.mubr.f32.gmra.mxu0 %v49
    %v163 = vpop.f32.mrf.mxu0
    %v164 = vadd.f32 %v95, %v163
    %v165 = vpop.f32.mrf.mxu0
    %166 = vmatprep.mubr.f32.mxu0 0.0
    %167 = vmatmul.mubr.f32.gmra.mxu0 %v50
    %v168 = vpop.f32.mrf.mxu0
    %v169 = vadd.f32 %v95, %v168
    %v170 = vpop.f32.mrf.mxu0
    %171 = vmatprep.mubr.f32.mxu0 0.0
    %172 = vmatmul.mubr.f32.gmra.mxu0 %v51
    %v173 = vpop.f32.mrf.mxu0
    %v174 = vadd.f32 %v95, %v173
    %v175 = vpop.f32.mrf.mxu0
    %176 = vmatprep.mubr.f32.mxu0 0.0
    %177 = vmatmul.mubr.f32.gmra.mxu0 %v52
    %v178 = vpop.f32.mrf.mxu0
    %v179 = vadd.f32 %v95, %v178
    %v180 = vpop.f32.mrf.mxu0
    %181 = vmatprep.mubr.f32.mxu0 0.0
    %182 = vmatmul.mubr.f32.gmra.mxu0 %v53
    %v183 = vpop.f32.mrf.mxu0
    %v184 = vadd.f32 %v95, %v183
    %v185 = vpop.f32.mrf.mxu0
    %186 = vmatprep.mubr.f32.mxu0 0.0
    %187 = vmatmul.mubr.f32.gmra.mxu0 %v54
    %v188 = vpop.f32.mrf.mxu0
    %v189 = vadd.f32 %v95, %v188
    %v190 = vpop.f32.mrf.mxu0
    %191 = vmatprep.mubr.f32.mxu0 0.0
    %192 = vmatmul.mubr.f32.gmra.mxu0 %v55
    %v193 = vpop.f32.mrf.mxu0
    %v194 = vadd.f32 %v95, %v193
    %v195 = vpop.f32.mrf.mxu0
    %196 = vmatprep.mubr.f32.mxu0 0.0
    %197 = vmatmul.mubr.f32.gmra.mxu0 %v56
    %v198 = vpop.f32.mrf.mxu0
    %v199 = vadd.f32 %v95, %v198
    %v200 = vpop.f32.mrf.mxu0
    %201 = vmatprep.mubr.f32.mxu0 0.0
    %202 = vmatmul.mubr.f32.gmra.mxu0 %v57
    %v203 = vpop.f32.mrf.mxu0
    %v204 = vadd.f32 %v95, %v203
    %v205 = vpop.f32.mrf.mxu0
    %206 = vmatprep.mubr.f32.mxu0 0.0
    %207 = vmatmul.mubr.f32.gmra.mxu0 %v58
    %v208 = vpop.f32.mrf.mxu0
    %v209 = vadd.f32 %v95, %v208
    %v210 = vpop.f32.mrf.mxu0
    %211 = vmatprep.mubr.f32.mxu0 0.0
    %212 = vmatmul.mubr.f32.gmra.mxu0 %v59
    %v213 = vpop.f32.mrf.mxu0
    %v214 = vadd.f32 %v95, %v213
    %v215 = vpop.f32.mrf.mxu0
    %216 = vmatprep.mubr.f32.mxu0 0.0
    %217 = vmatmul.mubr.f32.gmra.mxu0 %v60
    %v218 = vpop.f32.mrf.mxu0
    %v219 = vadd.f32 %v95, %v218
    %v220 = vpop.f32.mrf.mxu0
    %221 = vmatprep.mubr.f32.mxu0 0.0
    %222 = vmatmul.mubr.f32.gmra.mxu0 %v61
    %v223 = vpop.f32.mrf.mxu0
    %v224 = vadd.f32 %v95, %v223
    %v225 = vpop.f32.mrf.mxu0
    %226 = vmatprep.mubr.f32.mxu0 0.0
    %227 = vmatmul.mubr.f32.gmra.mxu0 %v62
    %v228 = vpop.f32.mrf.mxu0
    %v229 = vadd.f32 %v95, %v228
    %v230 = vpop.f32.mrf.mxu0
    %231 = vmatprep.mubr.f32.mxu0 0.0
    %232 = vmatmul.mubr.f32.gmra.mxu0 %v63
    %v233 = vpop.f32.mrf.mxu0
    %v234 = vadd.f32 %v95, %v233
    %v235 = vpop.f32.mrf.mxu0
    %236 = vmatprep.mubr.f32.mxu0 0.0
    %237 = vmatmul.mubr.f32.gmra.mxu0 %v64
    %v238 = vpop.f32.mrf.mxu0
    %v239 = vadd.f32 %v95, %v238
    %v240 = vpop.f32.mrf.mxu0
    %241 = vmatprep.mubr.f32.mxu0 0.0
    %242 = vmatmul.mubr.f32.gmra.mxu0 %v65
    %v243 = vpop.f32.mrf.mxu0
    %v244 = vadd.f32 %v95, %v243
    %v245 = vpop.f32.mrf.mxu0
    %246 = vmatprep.mubr.f32.mxu0 0.0
    %247 = vmatmul.mubr.f32.gmra.mxu0 %v66
    %v248 = vpop.f32.mrf.mxu0
    %v249 = vadd.f32 %v95, %v248
    %v250 = vpop.f32.mrf.mxu0
    %251 = vmatprep.mubr.f32.mxu0 0.0
    %252 = vmatmul.mubr.f32.gmra.mxu0 %v67
    %v253 = vpop.f32.mrf.mxu0
    %v254 = vadd.f32 %v95, %v253
    %v255 = vpop.f32.mrf.mxu0
    %256 = vmatprep.mubr.f32.mxu0 0.0
    %257 = vmatmul.mubr.f32.gmra.mxu0 %v68
    %v258 = vpop.f32.mrf.mxu0
    %v259 = vadd.f32 %v95, %v258
    %v260 = vpop.f32.mrf.mxu0
    %261 = vmatprep.mubr.f32.mxu0 0.0
    %262 = vmatmul.mubr.f32.gmra.mxu0 %v69
    %v263 = vpop.f32.mrf.mxu0
    %v264 = vadd.f32 %v95, %v263
    %v265 = vpop.f32.mrf.mxu0
    %266 = vmatprep.mubr.f32.mxu0 0.0
    %267 = vmatmul.mubr.f32.gmra.mxu0 %v70
    %v268 = vpop.f32.mrf.mxu0
    %v269 = vadd.f32 %v95, %v268
    %v270 = vpop.f32.mrf.mxu0
    %271 = vmatprep.mubr.f32.mxu0 0.0
    %272 = vmatmul.mubr.f32.gmra.mxu0 %v71
    %v273 = vpop.f32.mrf.mxu0
    %v274 = vadd.f32 %v95, %v273
    %v275 = vpop.f32.mrf.mxu0
    %276 = vmatprep.mubr.f32.mxu0 0.0
    %277 = vmatmul.mubr.f32.gmra.mxu0 %v72
    %v278 = vpop.f32.mrf.mxu0
    %v279 = vadd.f32 %v95, %v278
    %v280 = vpop.f32.mrf.mxu0
    %281 = vmatprep.mubr.f32.mxu0 0.0
    %282 = vmatmul.mubr.f32.gmra.mxu0 %v73
    %v283 = vpop.f32.mrf.mxu0
    %v284 = vadd.f32 %v95, %v283
    %v285 = vpop.f32.mrf.mxu0
    %286 = vdwg.mxu0
    %v287 = vmul.f32 %v164, 0.5
    %v288 = vmul.f32 %v169, 0.5
    %v289 = vmul.f32 %v174, 0.5
    %v290 = vmul.f32 %v179, 0.5
    %v291 = vmul.f32 %v184, 0.5
    %v292 = vmul.f32 %v189, 0.5
    %v293 = vmul.f32 %v194, 0.5
    %v294 = vmul.f32 %v199, 0.5
    %v295 = vmul.f32 %v204, 0.5
    %v296 = vmul.f32 %v209, 0.5
    %v297 = vmul.f32 %v214, 0.5
    %v298 = vmul.f32 %v219, 0.5
    %v299 = vmul.f32 %v224, 0.5
    %v300 = vmul.f32 %v229, 0.5
    %v301 = vmul.f32 %v234, 0.5
    %v302 = vmul.f32 %v239, 0.5
    %v303 = vmul.f32 %v244, 0.5
    %v304 = vmul.f32 %v249, 0.5
    %v305 = vmul.f32 %v254, 0.5
    %v306 = vmul.f32 %v259, 0.5
    %v307 = vmul.f32 %v264, 0.5
    %v308 = vmul.f32 %v269, 0.5
    %v309 = vmul.f32 %v274, 0.5
    %v310 = vmul.f32 %v279, 0.5
    %v311 = vmul.f32 %v284, 0.5
    %v312 = vmul.f32 %v164, 0.70710677
    %v313 = vmul.f32 %v169, 0.70710677
    %v314 = vmul.f32 %v174, 0.70710677
    %v315 = vmul.f32 %v179, 0.70710677
    %v316 = vmul.f32 %v184, 0.70710677
    %v317 = vmul.f32 %v189, 0.70710677
    %v318 = vmul.f32 %v194, 0.70710677
    %v319 = vmul.f32 %v199, 0.70710677
    %v320 = vmul.f32 %v204, 0.70710677
    %v321 = vmul.f32 %v209, 0.70710677
    %v322 = vmul.f32 %v214, 0.70710677
    %v323 = vmul.f32 %v219, 0.70710677
    %v324 = vmul.f32 %v224, 0.70710677
    %v325 = vmul.f32 %v229, 0.70710677
    %v326 = vmul.f32 %v234, 0.70710677
    %v327 = vmul.f32 %v239, 0.70710677
    %v328 = vmul.f32 %v244, 0.70710677
    %v329 = vmul.f32 %v249, 0.70710677
    %v330 = vmul.f32 %v254, 0.70710677
    %v331 = vmul.f32 %v259, 0.70710677
    %v332 = vmul.f32 %v264, 0.70710677
    %v333 = vmul.f32 %v269, 0.70710677
    %v334 = vmul.f32 %v274, 0.70710677
    %v335 = vmul.f32 %v279, 0.70710677
    %v336 = vmul.f32 %v284, 0.70710677
    %vm337 = vcmp.ge.f32.partialorder %v312, 0.0
    %vm338 = vcmp.ge.f32.partialorder %v313, 0.0
    %vm339 = vcmp.ge.f32.partialorder %v314, 0.0
    %vm340 = vcmp.ge.f32.partialorder %v315, 0.0
    %vm341 = vcmp.ge.f32.partialorder %v316, 0.0
    %vm342 = vcmp.ge.f32.partialorder %v317, 0.0
    %vm343 = vcmp.ge.f32.partialorder %v318, 0.0
    %vm344 = vcmp.ge.f32.partialorder %v319, 0.0
    %vm345 = vcmp.ge.f32.partialorder %v320, 0.0
    %vm346 = vcmp.ge.f32.partialorder %v321, 0.0
    %vm347 = vcmp.ge.f32.partialorder %v322, 0.0
    %vm348 = vcmp.ge.f32.partialorder %v323, 0.0
    %vm349 = vcmp.ge.f32.partialorder %v324, 0.0
    %vm350 = vcmp.ge.f32.partialorder %v325, 0.0
    %vm351 = vcmp.ge.f32.partialorder %v326, 0.0
    %vm352 = vcmp.ge.f32.partialorder %v327, 0.0
    %vm353 = vcmp.ge.f32.partialorder %v328, 0.0
    %vm354 = vcmp.ge.f32.partialorder %v329, 0.0
    %vm355 = vcmp.ge.f32.partialorder %v330, 0.0
    %vm356 = vcmp.ge.f32.partialorder %v331, 0.0
    %vm357 = vcmp.ge.f32.partialorder %v332, 0.0
    %vm358 = vcmp.ge.f32.partialorder %v333, 0.0
    %vm359 = vcmp.ge.f32.partialorder %v334, 0.0
    %vm360 = vcmp.ge.f32.partialorder %v335, 0.0
    %vm361 = vcmp.ge.f32.partialorder %v336, 0.0
    %v362 = vsel %vm337, 1.0, -1.0
    %v363 = vsel %vm338, 1.0, -1.0
    %v364 = vsel %vm339, 1.0, -1.0
    %v365 = vsel %vm340, 1.0, -1.0
    %v366 = vsel %vm341, 1.0, -1.0
    %v367 = vsel %vm342, 1.0, -1.0
    %v368 = vsel %vm343, 1.0, -1.0
    %v369 = vsel %vm344, 1.0, -1.0
    %v370 = vsel %vm345, 1.0, -1.0
    %v371 = vsel %vm346, 1.0, -1.0
    %v372 = vsel %vm347, 1.0, -1.0
    %v373 = vsel %vm348, 1.0, -1.0
    %v374 = vsel %vm349, 1.0, -1.0
    %v375 = vsel %vm350, 1.0, -1.0
    %v376 = vsel %vm351, 1.0, -1.0
    %v377 = vsel %vm352, 1.0, -1.0
    %v378 = vsel %vm353, 1.0, -1.0
    %v379 = vsel %vm354, 1.0, -1.0
    %v380 = vsel %vm355, 1.0, -1.0
    %v381 = vsel %vm356, 1.0, -1.0
    %v382 = vsel %vm357, 1.0, -1.0
    %v383 = vsel %vm358, 1.0, -1.0
    %v384 = vsel %vm359, 1.0, -1.0
    %v385 = vsel %vm360, 1.0, -1.0
    %v386 = vsel %vm361, 1.0, -1.0
    %v387 = vand.u32 2147483647, %v312
    %v388 = vand.u32 2147483647, %v313
    %v389 = vand.u32 2147483647, %v314
    %v390 = vand.u32 2147483647, %v315
    %v391 = vand.u32 2147483647, %v316
    %v392 = vand.u32 2147483647, %v317
    %v393 = vand.u32 2147483647, %v318
    %v394 = vand.u32 2147483647, %v319
    %v395 = vand.u32 2147483647, %v320
    %v396 = vand.u32 2147483647, %v321
    %v397 = vand.u32 2147483647, %v322
    %v398 = vand.u32 2147483647, %v323
    %v399 = vand.u32 2147483647, %v324
    %v400 = vand.u32 2147483647, %v325
    %v401 = vand.u32 2147483647, %v326
    %v402 = vand.u32 2147483647, %v327
    %v403 = vand.u32 2147483647, %v328
    %v404 = vand.u32 2147483647, %v329
    %v405 = vand.u32 2147483647, %v330
    %v406 = vand.u32 2147483647, %v331
    %v407 = vand.u32 2147483647, %v332
    %v408 = vand.u32 2147483647, %v333
    %v409 = vand.u32 2147483647, %v334
    %v410 = vand.u32 2147483647, %v335
    %v411 = vand.u32 2147483647, %v336
    %v412 = vmul.f32 %v387, 0.3275911
    %v413 = vmul.f32 %v388, 0.3275911
    %v414 = vmul.f32 %v389, 0.3275911
    %v415 = vmul.f32 %v390, 0.3275911
    %v416 = vmul.f32 %v391, 0.3275911
    %v417 = vmul.f32 %v392, 0.3275911
    %v418 = vmul.f32 %v393, 0.3275911
    %v419 = vmul.f32 %v394, 0.3275911
    %v420 = vmul.f32 %v395, 0.3275911
    %v421 = vmul.f32 %v396, 0.3275911
    %v422 = vmul.f32 %v397, 0.3275911
    %v423 = vmul.f32 %v398, 0.3275911
    %v424 = vmul.f32 %v399, 0.3275911
    %v425 = vmul.f32 %v400, 0.3275911
    %v426 = vmul.f32 %v401, 0.3275911
    %v427 = vmul.f32 %v402, 0.3275911
    %v428 = vmul.f32 %v403, 0.3275911
    %v429 = vmul.f32 %v404, 0.3275911
    %v430 = vmul.f32 %v405, 0.3275911
    %v431 = vmul.f32 %v406, 0.3275911
    %v432 = vmul.f32 %v407, 0.3275911
    %v433 = vmul.f32 %v408, 0.3275911
    %v434 = vmul.f32 %v409, 0.3275911
    %v435 = vmul.f32 %v410, 0.3275911
    %v436 = vmul.f32 %v411, 0.3275911
    %v437 = vadd.f32 %v412, 1.0
    %v438 = vadd.f32 %v413, 1.0
    %v439 = vadd.f32 %v414, 1.0
    %v440 = vadd.f32 %v415, 1.0
    %v441 = vadd.f32 %v416, 1.0
    %v442 = vadd.f32 %v417, 1.0
    %v443 = vadd.f32 %v418, 1.0
    %v444 = vadd.f32 %v419, 1.0
    %v445 = vadd.f32 %v420, 1.0
    %v446 = vadd.f32 %v421, 1.0
    %v447 = vadd.f32 %v422, 1.0
    %v448 = vadd.f32 %v423, 1.0
    %v449 = vadd.f32 %v424, 1.0
    %v450 = vadd.f32 %v425, 1.0
    %v451 = vadd.f32 %v426, 1.0
    %v452 = vadd.f32 %v427, 1.0
    %v453 = vadd.f32 %v428, 1.0
    %v454 = vadd.f32 %v429, 1.0
    %v455 = vadd.f32 %v430, 1.0
    %v456 = vadd.f32 %v431, 1.0
    %v457 = vadd.f32 %v432, 1.0
    %v458 = vadd.f32 %v433, 1.0
    %v459 = vadd.f32 %v434, 1.0
    %v460 = vadd.f32 %v435, 1.0
    %v461 = vadd.f32 %v436, 1.0
    %v462 = vrcp.pop %v437
    %v463 = vmul.f32 1.0, %v462
    %v464 = vrcp.pop %v438
    %v465 = vmul.f32 1.0, %v464
    %v466 = vrcp.pop %v439
    %v467 = vmul.f32 1.0, %v466
    %v468 = vrcp.pop %v440
    %v469 = vmul.f32 1.0, %v468
    %v470 = vrcp.pop %v441
    %v471 = vmul.f32 1.0, %v470
    %v472 = vrcp.pop %v442
    %v473 = vmul.f32 1.0, %v472
    %v474 = vrcp.pop %v443
    %v475 = vmul.f32 1.0, %v474
    %v476 = vrcp.pop %v444
    %v477 = vmul.f32 1.0, %v476
    %v478 = vrcp.pop %v445
    %v479 = vmul.f32 1.0, %v478
    %v480 = vrcp.pop %v446
    %v481 = vmul.f32 1.0, %v480
    %v482 = vrcp.pop %v447
    %v483 = vmul.f32 1.0, %v482
    %v484 = vrcp.pop %v448
    %v485 = vmul.f32 1.0, %v484
    %v486 = vrcp.pop %v449
    %v487 = vmul.f32 1.0, %v486
    %v488 = vrcp.pop %v450
    %v489 = vmul.f32 1.0, %v488
    %v490 = vrcp.pop %v451
    %v491 = vmul.f32 1.0, %v490
    %v492 = vrcp.pop %v452
    %v493 = vmul.f32 1.0, %v492
    %v494 = vrcp.pop %v453
    %v495 = vmul.f32 1.0, %v494
    %v496 = vrcp.pop %v454
    %v497 = vmul.f32 1.0, %v496
    %v498 = vrcp.pop %v455
    %v499 = vmul.f32 1.0, %v498
    %v500 = vrcp.pop %v456
    %v501 = vmul.f32 1.0, %v500
    %v502 = vrcp.pop %v457
    %v503 = vmul.f32 1.0, %v502
    %v504 = vrcp.pop %v458
    %v505 = vmul.f32 1.0, %v504
    %v506 = vrcp.pop %v459
    %v507 = vmul.f32 1.0, %v506
    %v508 = vrcp.pop %v460
    %v509 = vmul.f32 1.0, %v508
    %v510 = vrcp.pop %v461
    %v511 = vmul.f32 1.0, %v510
    %v512 = vmul.f32 %v463, 1.0614054
    %v513 = vmul.f32 %v465, 1.0614054
    %v514 = vmul.f32 %v467, 1.0614054
    %v515 = vmul.f32 %v469, 1.0614054
    %v516 = vmul.f32 %v471, 1.0614054
    %v517 = vmul.f32 %v473, 1.0614054
    %v518 = vmul.f32 %v475, 1.0614054
    %v519 = vmul.f32 %v477, 1.0614054
    %v520 = vmul.f32 %v479, 1.0614054
    %v521 = vmul.f32 %v481, 1.0614054
    %v522 = vmul.f32 %v483, 1.0614054
    %v523 = vmul.f32 %v485, 1.0614054
    %v524 = vmul.f32 %v487, 1.0614054
    %v525 = vmul.f32 %v489, 1.0614054
    %v526 = vmul.f32 %v491, 1.0614054
    %v527 = vmul.f32 %v493, 1.0614054
    %v528 = vmul.f32 %v495, 1.0614054
    %v529 = vmul.f32 %v497, 1.0614054
    %v530 = vmul.f32 %v499, 1.0614054
    %v531 = vmul.f32 %v501, 1.0614054
    %v532 = vmul.f32 %v503, 1.0614054
    %v533 = vmul.f32 %v505, 1.0614054
    %v534 = vmul.f32 %v507, 1.0614054
    %v535 = vmul.f32 %v509, 1.0614054
    %v536 = vmul.f32 %v511, 1.0614054
    %v537 = vadd.f32 %v512, -1.4531521
    %v538 = vadd.f32 %v513, -1.4531521
    %v539 = vadd.f32 %v514, -1.4531521
    %v540 = vadd.f32 %v515, -1.4531521
    %v541 = vadd.f32 %v516, -1.4531521
    %v542 = vadd.f32 %v517, -1.4531521
    %v543 = vadd.f32 %v518, -1.4531521
    %v544 = vadd.f32 %v519, -1.4531521
    %v545 = vadd.f32 %v520, -1.4531521
    %v546 = vadd.f32 %v521, -1.4531521
    %v547 = vadd.f32 %v522, -1.4531521
    %v548 = vadd.f32 %v523, -1.4531521
    %v549 = vadd.f32 %v524, -1.4531521
    %v550 = vadd.f32 %v525, -1.4531521
    %v551 = vadd.f32 %v526, -1.4531521
    %v552 = vadd.f32 %v527, -1.4531521
    %v553 = vadd.f32 %v528, -1.4531521
    %v554 = vadd.f32 %v529, -1.4531521
    %v555 = vadd.f32 %v530, -1.4531521
    %v556 = vadd.f32 %v531, -1.4531521
    %v557 = vadd.f32 %v532, -1.4531521
    %v558 = vadd.f32 %v533, -1.4531521
    %v559 = vadd.f32 %v534, -1.4531521
    %v560 = vadd.f32 %v535, -1.4531521
    %v561 = vadd.f32 %v536, -1.4531521
    %v562 = vmul.f32 %v537, %v463
    %v563 = vmul.f32 %v538, %v465
    %v564 = vmul.f32 %v539, %v467
    %v565 = vmul.f32 %v540, %v469
    %v566 = vmul.f32 %v541, %v471
    %v567 = vmul.f32 %v542, %v473
    %v568 = vmul.f32 %v543, %v475
    %v569 = vmul.f32 %v544, %v477
    %v570 = vmul.f32 %v545, %v479
    %v571 = vmul.f32 %v546, %v481
    %v572 = vmul.f32 %v547, %v483
    %v573 = vmul.f32 %v548, %v485
    %v574 = vmul.f32 %v549, %v487
    %v575 = vmul.f32 %v550, %v489
    %v576 = vmul.f32 %v551, %v491
    %v577 = vmul.f32 %v552, %v493
    %v578 = vmul.f32 %v553, %v495
    %v579 = vmul.f32 %v554, %v497
    %v580 = vmul.f32 %v555, %v499
    %v581 = vmul.f32 %v556, %v501
    %v582 = vmul.f32 %v557, %v503
    %v583 = vmul.f32 %v558, %v505
    %v584 = vmul.f32 %v559, %v507
    %v585 = vmul.f32 %v560, %v509
    %v586 = vmul.f32 %v561, %v511
    %v587 = vadd.f32 %v562, 1.4214138
    %v588 = vadd.f32 %v563, 1.4214138
    %v589 = vadd.f32 %v564, 1.4214138
    %v590 = vadd.f32 %v565, 1.4214138
    %v591 = vadd.f32 %v566, 1.4214138
    %v592 = vadd.f32 %v567, 1.4214138
    %v593 = vadd.f32 %v568, 1.4214138
    %v594 = vadd.f32 %v569, 1.4214138
    %v595 = vadd.f32 %v570, 1.4214138
    %v596 = vadd.f32 %v571, 1.4214138
    %v597 = vadd.f32 %v572, 1.4214138
    %v598 = vadd.f32 %v573, 1.4214138
    %v599 = vadd.f32 %v574, 1.4214138
    %v600 = vadd.f32 %v575, 1.4214138
    %v601 = vadd.f32 %v576, 1.4214138
    %v602 = vadd.f32 %v577, 1.4214138
    %v603 = vadd.f32 %v578, 1.4214138
    %v604 = vadd.f32 %v579, 1.4214138
    %v605 = vadd.f32 %v580, 1.4214138
    %v606 = vadd.f32 %v581, 1.4214138
    %v607 = vadd.f32 %v582, 1.4214138
    %v608 = vadd.f32 %v583, 1.4214138
    %v609 = vadd.f32 %v584, 1.4214138
    %v610 = vadd.f32 %v585, 1.4214138
    %v611 = vadd.f32 %v586, 1.4214138
    %v612 = vmul.f32 %v587, %v463
    %v613 = vmul.f32 %v588, %v465
    %v614 = vmul.f32 %v589, %v467
    %v615 = vmul.f32 %v590, %v469
    %v616 = vmul.f32 %v591, %v471
    %v617 = vmul.f32 %v592, %v473
    %v618 = vmul.f32 %v593, %v475
    %v619 = vmul.f32 %v594, %v477
    %v620 = vmul.f32 %v595, %v479
    %v621 = vmul.f32 %v596, %v481
    %v622 = vmul.f32 %v597, %v483
    %v623 = vmul.f32 %v598, %v485
    %v624 = vmul.f32 %v599, %v487
    %v625 = vmul.f32 %v600, %v489
    %v626 = vmul.f32 %v601, %v491
    %v627 = vmul.f32 %v602, %v493
    %v628 = vmul.f32 %v603, %v495
    %v629 = vmul.f32 %v604, %v497
    %v630 = vmul.f32 %v605, %v499
    %v631 = vmul.f32 %v606, %v501
    %v632 = vmul.f32 %v607, %v503
    %v633 = vmul.f32 %v608, %v505
    %v634 = vmul.f32 %v609, %v507
    %v635 = vmul.f32 %v610, %v509
    %v636 = vmul.f32 %v611, %v511
    %v637 = vadd.f32 %v612, -0.28449672
    %v638 = vadd.f32 %v613, -0.28449672
    %v639 = vadd.f32 %v614, -0.28449672
    %v640 = vadd.f32 %v615, -0.28449672
    %v641 = vadd.f32 %v616, -0.28449672
    %v642 = vadd.f32 %v617, -0.28449672
    %v643 = vadd.f32 %v618, -0.28449672
    %v644 = vadd.f32 %v619, -0.28449672
    %v645 = vadd.f32 %v620, -0.28449672
    %v646 = vadd.f32 %v621, -0.28449672
    %v647 = vadd.f32 %v622, -0.28449672
    %v648 = vadd.f32 %v623, -0.28449672
    %v649 = vadd.f32 %v624, -0.28449672
    %v650 = vadd.f32 %v625, -0.28449672
    %v651 = vadd.f32 %v626, -0.28449672
    %v652 = vadd.f32 %v627, -0.28449672
    %v653 = vadd.f32 %v628, -0.28449672
    %v654 = vadd.f32 %v629, -0.28449672
    %v655 = vadd.f32 %v630, -0.28449672
    %v656 = vadd.f32 %v631, -0.28449672
    %v657 = vadd.f32 %v632, -0.28449672
    %v658 = vadd.f32 %v633, -0.28449672
    %v659 = vadd.f32 %v634, -0.28449672
    %v660 = vadd.f32 %v635, -0.28449672
    %v661 = vadd.f32 %v636, -0.28449672
    %v662 = vmul.f32 %v637, %v463
    %v663 = vmul.f32 %v638, %v465
    %v664 = vmul.f32 %v639, %v467
    %v665 = vmul.f32 %v640, %v469
    %v666 = vmul.f32 %v641, %v471
    %v667 = vmul.f32 %v642, %v473
    %v668 = vmul.f32 %v643, %v475
    %v669 = vmul.f32 %v644, %v477
    %v670 = vmul.f32 %v645, %v479
    %v671 = vmul.f32 %v646, %v481
    %v672 = vmul.f32 %v647, %v483
    %v673 = vmul.f32 %v648, %v485
    %v674 = vmul.f32 %v649, %v487
    %v675 = vmul.f32 %v650, %v489
    %v676 = vmul.f32 %v651, %v491
    %v677 = vmul.f32 %v652, %v493
    %v678 = vmul.f32 %v653, %v495
    %v679 = vmul.f32 %v654, %v497
    %v680 = vmul.f32 %v655, %v499
    %v681 = vmul.f32 %v656, %v501
    %v682 = vmul.f32 %v657, %v503
    %v683 = vmul.f32 %v658, %v505
    %v684 = vmul.f32 %v659, %v507
    %v685 = vmul.f32 %v660, %v509
    %v686 = vmul.f32 %v661, %v511
    %v687 = vadd.f32 %v662, 0.2548296
    %v688 = vadd.f32 %v663, 0.2548296
    %v689 = vadd.f32 %v664, 0.2548296
    %v690 = vadd.f32 %v665, 0.2548296
    %v691 = vadd.f32 %v666, 0.2548296
    %v692 = vadd.f32 %v667, 0.2548296
    %v693 = vadd.f32 %v668, 0.2548296
    %v694 = vadd.f32 %v669, 0.2548296
    %v695 = vadd.f32 %v670, 0.2548296
    %v696 = vadd.f32 %v671, 0.2548296
    %v697 = vadd.f32 %v672, 0.2548296
    %v698 = vadd.f32 %v673, 0.2548296
    %v699 = vadd.f32 %v674, 0.2548296
    %v700 = vadd.f32 %v675, 0.2548296
    %v701 = vadd.f32 %v676, 0.2548296
    %v702 = vadd.f32 %v677, 0.2548296
    %v703 = vadd.f32 %v678, 0.2548296
    %v704 = vadd.f32 %v679, 0.2548296
    %v705 = vadd.f32 %v680, 0.2548296
    %v706 = vadd.f32 %v681, 0.2548296
    %v707 = vadd.f32 %v682, 0.2548296
    %v708 = vadd.f32 %v683, 0.2548296
    %v709 = vadd.f32 %v684, 0.2548296
    %v710 = vadd.f32 %v685, 0.2548296
    %v711 = vadd.f32 %v686, 0.2548296
    %v712 = vmul.f32 %v687, %v463
    %v713 = vmul.f32 %v688, %v465
    %v714 = vmul.f32 %v689, %v467
    %v715 = vmul.f32 %v690, %v469
    %v716 = vmul.f32 %v691, %v471
    %v717 = vmul.f32 %v692, %v473
    %v718 = vmul.f32 %v693, %v475
    %v719 = vmul.f32 %v694, %v477
    %v720 = vmul.f32 %v695, %v479
    %v721 = vmul.f32 %v696, %v481
    %v722 = vmul.f32 %v697, %v483
    %v723 = vmul.f32 %v698, %v485
    %v724 = vmul.f32 %v699, %v487
    %v725 = vmul.f32 %v700, %v489
    %v726 = vmul.f32 %v701, %v491
    %v727 = vmul.f32 %v702, %v493
    %v728 = vmul.f32 %v703, %v495
    %v729 = vmul.f32 %v704, %v497
    %v730 = vmul.f32 %v705, %v499
    %v731 = vmul.f32 %v706, %v501
    %v732 = vmul.f32 %v707, %v503
    %v733 = vmul.f32 %v708, %v505
    %v734 = vmul.f32 %v709, %v507
    %v735 = vmul.f32 %v710, %v509
    %v736 = vmul.f32 %v711, %v511
    %v737 = vsub.f32 0.0, %v387
    %v738 = vsub.f32 0.0, %v388
    %v739 = vsub.f32 0.0, %v389
    %v740 = vsub.f32 0.0, %v390
    %v741 = vsub.f32 0.0, %v391
    %v742 = vsub.f32 0.0, %v392
    %v743 = vsub.f32 0.0, %v393
    %v744 = vsub.f32 0.0, %v394
    %v745 = vsub.f32 0.0, %v395
    %v746 = vsub.f32 0.0, %v396
    %v747 = vsub.f32 0.0, %v397
    %v748 = vsub.f32 0.0, %v398
    %v749 = vsub.f32 0.0, %v399
    %v750 = vsub.f32 0.0, %v400
    %v751 = vsub.f32 0.0, %v401
    %v752 = vsub.f32 0.0, %v402
    %v753 = vsub.f32 0.0, %v403
    %v754 = vsub.f32 0.0, %v404
    %v755 = vsub.f32 0.0, %v405
    %v756 = vsub.f32 0.0, %v406
    %v757 = vsub.f32 0.0, %v407
    %v758 = vsub.f32 0.0, %v408
    %v759 = vsub.f32 0.0, %v409
    %v760 = vsub.f32 0.0, %v410
    %v761 = vsub.f32 0.0, %v411
    %v762 = vmul.f32 %v737, %v387
    %v763 = vmul.f32 %v738, %v388
    %v764 = vmul.f32 %v739, %v389
    %v765 = vmul.f32 %v740, %v390
    %v766 = vmul.f32 %v741, %v391
    %v767 = vmul.f32 %v742, %v392
    %v768 = vmul.f32 %v743, %v393
    %v769 = vmul.f32 %v744, %v394
    %v770 = vmul.f32 %v745, %v395
    %v771 = vmul.f32 %v746, %v396
    %v772 = vmul.f32 %v747, %v397
    %v773 = vmul.f32 %v748, %v398
    %v774 = vmul.f32 %v749, %v399
    %v775 = vmul.f32 %v750, %v400
    %v776 = vmul.f32 %v751, %v401
    %v777 = vmul.f32 %v752, %v402
    %v778 = vmul.f32 %v753, %v403
    %v779 = vmul.f32 %v754, %v404
    %v780 = vmul.f32 %v755, %v405
    %v781 = vmul.f32 %v756, %v406
    %v782 = vmul.f32 %v757, %v407
    %v783 = vmul.f32 %v758, %v408
    %v784 = vmul.f32 %v759, %v409
    %v785 = vmul.f32 %v760, %v410
    %v786 = vmul.f32 %v761, %v411
    %v787 = vmul.f32 %v762, 1.442695
    %v788 = vpow.pop %v787
    %v789 = vmul.f32 %v763, 1.442695
    %v790 = vpow.pop %v789
    %v791 = vmul.f32 %v764, 1.442695
    %v792 = vpow.pop %v791
    %v793 = vmul.f32 %v765, 1.442695
    %v794 = vpow.pop %v793
    %v795 = vmul.f32 %v766, 1.442695
    %v796 = vpow.pop %v795
    %v797 = vmul.f32 %v767, 1.442695
    %v798 = vpow.pop %v797
    %v799 = vmul.f32 %v768, 1.442695
    %v800 = vpow.pop %v799
    %v801 = vmul.f32 %v769, 1.442695
    %v802 = vpow.pop %v801
    %v803 = vmul.f32 %v770, 1.442695
    %v804 = vpow.pop %v803
    %v805 = vmul.f32 %v771, 1.442695
    %v806 = vpow.pop %v805
    %v807 = vmul.f32 %v772, 1.442695
    %v808 = vpow.pop %v807
    %v809 = vmul.f32 %v773, 1.442695
    %v810 = vpow.pop %v809
    %v811 = vmul.f32 %v774, 1.442695
    %v812 = vpow.pop %v811
    %v813 = vmul.f32 %v775, 1.442695
    %v814 = vpow.pop %v813
    %v815 = vmul.f32 %v776, 1.442695
    %v816 = vpow.pop %v815
    %v817 = vmul.f32 %v777, 1.442695
    %v818 = vpow.pop %v817
    %v819 = vmul.f32 %v778, 1.442695
    %v820 = vpow.pop %v819
    %v821 = vmul.f32 %v779, 1.442695
    %v822 = vpow.pop %v821
    %v823 = vmul.f32 %v780, 1.442695
    %v824 = vpow.pop %v823
    %v825 = vmul.f32 %v781, 1.442695
    %v826 = vpow.pop %v825
    %v827 = vmul.f32 %v782, 1.442695
    %v828 = vpow.pop %v827
    %v829 = vmul.f32 %v783, 1.442695
    %v830 = vpow.pop %v829
    %v831 = vmul.f32 %v784, 1.442695
    %v832 = vpow.pop %v831
    %v833 = vmul.f32 %v785, 1.442695
    %v834 = vpow.pop %v833
    %v835 = vmul.f32 %v786, 1.442695
    %v836 = vpow.pop %v835
    %v837 = vmul.f32 %v712, %v788
    %v838 = vmul.f32 %v713, %v790
    %v839 = vmul.f32 %v714, %v792
    %v840 = vmul.f32 %v715, %v794
    %v841 = vmul.f32 %v716, %v796
    %v842 = vmul.f32 %v717, %v798
    %v843 = vmul.f32 %v718, %v800
    %v844 = vmul.f32 %v719, %v802
    %v845 = vmul.f32 %v720, %v804
    %v846 = vmul.f32 %v721, %v806
    %v847 = vmul.f32 %v722, %v808
    %v848 = vmul.f32 %v723, %v810
    %v849 = vmul.f32 %v724, %v812
    %v850 = vmul.f32 %v725, %v814
    %v851 = vmul.f32 %v726, %v816
    %v852 = vmul.f32 %v727, %v818
    %v853 = vmul.f32 %v728, %v820
    %v854 = vmul.f32 %v729, %v822
    %v855 = vmul.f32 %v730, %v824
    %v856 = vmul.f32 %v731, %v826
    %v857 = vmul.f32 %v732, %v828
    %v858 = vmul.f32 %v733, %v830
    %v859 = vmul.f32 %v734, %v832
    %v860 = vmul.f32 %v735, %v834
    %v861 = vmul.f32 %v736, %v836
    %v862 = vsub.f32 1.0, %v837
    %v863 = vsub.f32 1.0, %v838
    %v864 = vsub.f32 1.0, %v839
    %v865 = vsub.f32 1.0, %v840
    %v866 = vsub.f32 1.0, %v841
    %v867 = vsub.f32 1.0, %v842
    %v868 = vsub.f32 1.0, %v843
    %v869 = vsub.f32 1.0, %v844
    %v870 = vsub.f32 1.0, %v845
    %v871 = vsub.f32 1.0, %v846
    %v872 = vsub.f32 1.0, %v847
    %v873 = vsub.f32 1.0, %v848
    %v874 = vsub.f32 1.0, %v849
    %v875 = vsub.f32 1.0, %v850
    %v876 = vsub.f32 1.0, %v851
    %v877 = vsub.f32 1.0, %v852
    %v878 = vsub.f32 1.0, %v853
    %v879 = vsub.f32 1.0, %v854
    %v880 = vsub.f32 1.0, %v855
    %v881 = vsub.f32 1.0, %v856
    %v882 = vsub.f32 1.0, %v857
    %v883 = vsub.f32 1.0, %v858
    %v884 = vsub.f32 1.0, %v859
    %v885 = vsub.f32 1.0, %v860
    %v886 = vsub.f32 1.0, %v861
    %v887 = vmul.f32 %v362, %v862
    %v888 = vmul.f32 %v363, %v863
    %v889 = vmul.f32 %v364, %v864
    %v890 = vmul.f32 %v365, %v865
    %v891 = vmul.f32 %v366, %v866
    %v892 = vmul.f32 %v367, %v867
    %v893 = vmul.f32 %v368, %v868
    %v894 = vmul.f32 %v369, %v869
    %v895 = vmul.f32 %v370, %v870
    %v896 = vmul.f32 %v371, %v871
    %v897 = vmul.f32 %v372, %v872
    %v898 = vmul.f32 %v373, %v873
    %v899 = vmul.f32 %v374, %v874
    %v900 = vmul.f32 %v375, %v875
    %v901 = vmul.f32 %v376, %v876
    %v902 = vmul.f32 %v377, %v877
    %v903 = vmul.f32 %v378, %v878
    %v904 = vmul.f32 %v379, %v879
    %v905 = vmul.f32 %v380, %v880
    %v906 = vmul.f32 %v381, %v881
    %v907 = vmul.f32 %v382, %v882
    %v908 = vmul.f32 %v383, %v883
    %v909 = vmul.f32 %v384, %v884
    %v910 = vmul.f32 %v385, %v885
    %v911 = vmul.f32 %v386, %v886
    %v912 = vadd.f32 %v887, 1.0
    %v913 = vadd.f32 %v888, 1.0
    %v914 = vadd.f32 %v889, 1.0
    %v915 = vadd.f32 %v890, 1.0
    %v916 = vadd.f32 %v891, 1.0
    %v917 = vadd.f32 %v892, 1.0
    %v918 = vadd.f32 %v893, 1.0
    %v919 = vadd.f32 %v894, 1.0
    %v920 = vadd.f32 %v895, 1.0
    %v921 = vadd.f32 %v896, 1.0
    %v922 = vadd.f32 %v897, 1.0
    %v923 = vadd.f32 %v898, 1.0
    %v924 = vadd.f32 %v899, 1.0
    %v925 = vadd.f32 %v900, 1.0
    %v926 = vadd.f32 %v901, 1.0
    %v927 = vadd.f32 %v902, 1.0
    %v928 = vadd.f32 %v903, 1.0
    %v929 = vadd.f32 %v904, 1.0
    %v930 = vadd.f32 %v905, 1.0
    %v931 = vadd.f32 %v906, 1.0
    %v932 = vadd.f32 %v907, 1.0
    %v933 = vadd.f32 %v908, 1.0
    %v934 = vadd.f32 %v909, 1.0
    %v935 = vadd.f32 %v910, 1.0
    %v936 = vadd.f32 %v911, 1.0
    %v937 = vmul.f32 %v287, %v912
    %v938 = vmul.f32 %v288, %v913
    %v939 = vmul.f32 %v289, %v914
    %v940 = vmul.f32 %v290, %v915
    %v941 = vmul.f32 %v291, %v916
    %v942 = vmul.f32 %v292, %v917
    %v943 = vmul.f32 %v293, %v918
    %v944 = vmul.f32 %v294, %v919
    %v945 = vmul.f32 %v295, %v920
    %v946 = vmul.f32 %v296, %v921
    %v947 = vmul.f32 %v297, %v922
    %v948 = vmul.f32 %v298, %v923
    %v949 = vmul.f32 %v299, %v924
    %v950 = vmul.f32 %v300, %v925
    %v951 = vmul.f32 %v301, %v926
    %v952 = vmul.f32 %v302, %v927
    %v953 = vmul.f32 %v303, %v928
    %v954 = vmul.f32 %v304, %v929
    %v955 = vmul.f32 %v305, %v930
    %v956 = vmul.f32 %v306, %v931
    %v957 = vmul.f32 %v307, %v932
    %v958 = vmul.f32 %v308, %v933
    %v959 = vmul.f32 %v309, %v934
    %v960 = vmul.f32 %v310, %v935
    %v961 = vmul.f32 %v311, %v936
    %962 = vadd.xlane.f32.xlu0 %v937
    %v963 = vpop.xlane.xlu0 %962
    %964 = vadd.xlane.f32.xlu0 %v938
    %v965 = vpop.xlane.xlu0 %964
    %966 = vadd.xlane.f32.xlu0 %v939
    %v967 = vpop.xlane.xlu0 %966
    %968 = vadd.xlane.f32.xlu0 %v940
    %v969 = vpop.xlane.xlu0 %968
    %970 = vadd.xlane.f32.xlu0 %v941
    %v971 = vpop.xlane.xlu0 %970
    %972 = vadd.xlane.f32.xlu0 %v942
    %v973 = vpop.xlane.xlu0 %972
    %974 = vadd.xlane.f32.xlu0 %v943
    %v975 = vpop.xlane.xlu0 %974
    %976 = vadd.xlane.f32.xlu0 %v944
    %v977 = vpop.xlane.xlu0 %976
    %978 = vadd.xlane.f32.xlu0 %v945
    %v979 = vpop.xlane.xlu0 %978
    %980 = vadd.xlane.f32.xlu0 %v946
    %v981 = vpop.xlane.xlu0 %980
    %982 = vadd.xlane.f32.xlu0 %v947
    %v983 = vpop.xlane.xlu0 %982
    %984 = vadd.xlane.f32.xlu0 %v948
    %v985 = vpop.xlane.xlu0 %984
    %986 = vadd.xlane.f32.xlu0 %v949
    %v987 = vpop.xlane.xlu0 %986
    %988 = vadd.xlane.f32.xlu0 %v950
    %v989 = vpop.xlane.xlu0 %988
    %990 = vadd.xlane.f32.xlu0 %v951
    %v991 = vpop.xlane.xlu0 %990
    %992 = vadd.xlane.f32.xlu0 %v952
    %v993 = vpop.xlane.xlu0 %992
    %994 = vadd.xlane.f32.xlu0 %v953
    %v995 = vpop.xlane.xlu0 %994
    %996 = vadd.xlane.f32.xlu0 %v954
    %v997 = vpop.xlane.xlu0 %996
    %998 = vadd.xlane.f32.xlu0 %v955
    %v999 = vpop.xlane.xlu0 %998
    %1000 = vadd.xlane.f32.xlu0 %v956
    %v1001 = vpop.xlane.xlu0 %1000
    %1002 = vadd.xlane.f32.xlu0 %v957
    %v1003 = vpop.xlane.xlu0 %1002
    %1004 = vadd.xlane.f32.xlu0 %v958
    %v1005 = vpop.xlane.xlu0 %1004
    %1006 = vadd.xlane.f32.xlu0 %v959
    %v1007 = vpop.xlane.xlu0 %1006
    %1008 = vadd.xlane.f32.xlu0 %v960
    %v1009 = vpop.xlane.xlu0 %1008
    %1010 = vadd.xlane.f32.xlu0 %v961
    %v1011 = vpop.xlane.xlu0 %1010
    %v1012 = vrcp.pop 128.0
    %v1013 = vmul.f32 %v963, %v1012
    %v1014 = vmul.f32 %v965, %v1012
    %v1015 = vmul.f32 %v967, %v1012
    %v1016 = vmul.f32 %v969, %v1012
    %v1017 = vmul.f32 %v971, %v1012
    %v1018 = vmul.f32 %v973, %v1012
    %v1019 = vmul.f32 %v975, %v1012
    %v1020 = vmul.f32 %v977, %v1012
    %v1021 = vmul.f32 %v979, %v1012
    %v1022 = vmul.f32 %v981, %v1012
    %v1023 = vmul.f32 %v983, %v1012
    %v1024 = vmul.f32 %v985, %v1012
    %v1025 = vmul.f32 %v987, %v1012
    %v1026 = vmul.f32 %v989, %v1012
    %v1027 = vmul.f32 %v991, %v1012
    %v1028 = vmul.f32 %v993, %v1012
    %v1029 = vmul.f32 %v995, %v1012
    %v1030 = vmul.f32 %v997, %v1012
    %v1031 = vmul.f32 %v999, %v1012
    %v1032 = vmul.f32 %v1001, %v1012
    %v1033 = vmul.f32 %v1003, %v1012
    %v1034 = vmul.f32 %v1005, %v1012
    %v1035 = vmul.f32 %v1007, %v1012
    %v1036 = vmul.f32 %v1009, %v1012
    %v1037 = vmul.f32 %v1011, %v1012
    %v1038 = vsub.f32 %v937, %v1013
    %v1039 = vsub.f32 %v938, %v1014
    %v1040 = vsub.f32 %v939, %v1015
    %v1041 = vsub.f32 %v940, %v1016
    %v1042 = vsub.f32 %v941, %v1017
    %v1043 = vsub.f32 %v942, %v1018
    %v1044 = vsub.f32 %v943, %v1019
    %v1045 = vsub.f32 %v944, %v1020
    %v1046 = vsub.f32 %v945, %v1021
    %v1047 = vsub.f32 %v946, %v1022
    %v1048 = vsub.f32 %v947, %v1023
    %v1049 = vsub.f32 %v948, %v1024
    %v1050 = vsub.f32 %v949, %v1025
    %v1051 = vsub.f32 %v950, %v1026
    %v1052 = vsub.f32 %v951, %v1027
    %v1053 = vsub.f32 %v952, %v1028
    %v1054 = vsub.f32 %v953, %v1029
    %v1055 = vsub.f32 %v954, %v1030
    %v1056 = vsub.f32 %v955, %v1031
    %v1057 = vsub.f32 %v956, %v1032
    %v1058 = vsub.f32 %v957, %v1033
    %v1059 = vsub.f32 %v958, %v1034
    %v1060 = vsub.f32 %v959, %v1035
    %v1061 = vsub.f32 %v960, %v1036
    %v1062 = vsub.f32 %v961, %v1037
    %v1063 = vmul.f32 %v1038, %v1038
    %v1064 = vmul.f32 %v1039, %v1039
    %v1065 = vmul.f32 %v1040, %v1040
    %v1066 = vmul.f32 %v1041, %v1041
    %v1067 = vmul.f32 %v1042, %v1042
    %v1068 = vmul.f32 %v1043, %v1043
    %v1069 = vmul.f32 %v1044, %v1044
    %v1070 = vmul.f32 %v1045, %v1045
    %v1071 = vmul.f32 %v1046, %v1046
    %v1072 = vmul.f32 %v1047, %v1047
    %v1073 = vmul.f32 %v1048, %v1048
    %v1074 = vmul.f32 %v1049, %v1049
    %v1075 = vmul.f32 %v1050, %v1050
    %v1076 = vmul.f32 %v1051, %v1051
    %v1077 = vmul.f32 %v1052, %v1052
    %v1078 = vmul.f32 %v1053, %v1053
    %v1079 = vmul.f32 %v1054, %v1054
    %v1080 = vmul.f32 %v1055, %v1055
    %v1081 = vmul.f32 %v1056, %v1056
    %v1082 = vmul.f32 %v1057, %v1057
    %v1083 = vmul.f32 %v1058, %v1058
    %v1084 = vmul.f32 %v1059, %v1059
    %v1085 = vmul.f32 %v1060, %v1060
    %v1086 = vmul.f32 %v1061, %v1061
    %v1087 = vmul.f32 %v1062, %v1062
    %1088 = vadd.xlane.f32.xlu0 %v1063
    %v1089 = vpop.xlane.xlu0 %1088
    %1090 = vadd.xlane.f32.xlu0 %v1064
    %v1091 = vpop.xlane.xlu0 %1090
    %1092 = vadd.xlane.f32.xlu0 %v1065
    %v1093 = vpop.xlane.xlu0 %1092
    %1094 = vadd.xlane.f32.xlu0 %v1066
    %v1095 = vpop.xlane.xlu0 %1094
    %1096 = vadd.xlane.f32.xlu0 %v1067
    %v1097 = vpop.xlane.xlu0 %1096
    %1098 = vadd.xlane.f32.xlu0 %v1068
    %v1099 = vpop.xlane.xlu0 %1098
    %1100 = vadd.xlane.f32.xlu0 %v1069
    %v1101 = vpop.xlane.xlu0 %1100
    %1102 = vadd.xlane.f32.xlu0 %v1070
    %v1103 = vpop.xlane.xlu0 %1102
    %1104 = vadd.xlane.f32.xlu0 %v1071
    %v1105 = vpop.xlane.xlu0 %1104
    %1106 = vadd.xlane.f32.xlu0 %v1072
    %v1107 = vpop.xlane.xlu0 %1106
    %1108 = vadd.xlane.f32.xlu0 %v1073
    %v1109 = vpop.xlane.xlu0 %1108
    %1110 = vadd.xlane.f32.xlu0 %v1074
    %v1111 = vpop.xlane.xlu0 %1110
    %1112 = vadd.xlane.f32.xlu0 %v1075
    %v1113 = vpop.xlane.xlu0 %1112
    %1114 = vadd.xlane.f32.xlu0 %v1076
    %v1115 = vpop.xlane.xlu0 %1114
    %1116 = vadd.xlane.f32.xlu0 %v1077
    %v1117 = vpop.xlane.xlu0 %1116
    %1118 = vadd.xlane.f32.xlu0 %v1078
    %v1119 = vpop.xlane.xlu0 %1118
    %1120 = vadd.xlane.f32.xlu0 %v1079
    %v1121 = vpop.xlane.xlu0 %1120
    %1122 = vadd.xlane.f32.xlu0 %v1080
    %v1123 = vpop.xlane.xlu0 %1122
    %1124 = vadd.xlane.f32.xlu0 %v1081
    %v1125 = vpop.xlane.xlu0 %1124
    %1126 = vadd.xlane.f32.xlu0 %v1082
    %v1127 = vpop.xlane.xlu0 %1126
    %1128 = vadd.xlane.f32.xlu0 %v1083
    %v1129 = vpop.xlane.xlu0 %1128
    %1130 = vadd.xlane.f32.xlu0 %v1084
    %v1131 = vpop.xlane.xlu0 %1130
    %1132 = vadd.xlane.f32.xlu0 %v1085
    %v1133 = vpop.xlane.xlu0 %1132
    %1134 = vadd.xlane.f32.xlu0 %v1086
    %v1135 = vpop.xlane.xlu0 %1134
    %1136 = vadd.xlane.f32.xlu0 %v1087
    %v1137 = vpop.xlane.xlu0 %1136
    %v1138 = vmul.f32 %v1089, %v1012
    %v1139 = vmul.f32 %v1091, %v1012
    %v1140 = vmul.f32 %v1093, %v1012
    %v1141 = vmul.f32 %v1095, %v1012
    %v1142 = vmul.f32 %v1097, %v1012
    %v1143 = vmul.f32 %v1099, %v1012
    %v1144 = vmul.f32 %v1101, %v1012
    %v1145 = vmul.f32 %v1103, %v1012
    %v1146 = vmul.f32 %v1105, %v1012
    %v1147 = vmul.f32 %v1107, %v1012
    %v1148 = vmul.f32 %v1109, %v1012
    %v1149 = vmul.f32 %v1111, %v1012
    %v1150 = vmul.f32 %v1113, %v1012
    %v1151 = vmul.f32 %v1115, %v1012
    %v1152 = vmul.f32 %v1117, %v1012
    %v1153 = vmul.f32 %v1119, %v1012
    %v1154 = vmul.f32 %v1121, %v1012
    %v1155 = vmul.f32 %v1123, %v1012
    %v1156 = vmul.f32 %v1125, %v1012
    %v1157 = vmul.f32 %v1127, %v1012
    %v1158 = vmul.f32 %v1129, %v1012
    %v1159 = vmul.f32 %v1131, %v1012
    %v1160 = vmul.f32 %v1133, %v1012
    %v1161 = vmul.f32 %v1135, %v1012
    %v1162 = vmul.f32 %v1137, %v1012
    %v1163 = vadd.f32 %v1138, 1e-12
    %v1164 = vadd.f32 %v1139, 1e-12
    %v1165 = vadd.f32 %v1140, 1e-12
    %v1166 = vadd.f32 %v1141, 1e-12
    %v1167 = vadd.f32 %v1142, 1e-12
    %v1168 = vadd.f32 %v1143, 1e-12
    %v1169 = vadd.f32 %v1144, 1e-12
    %v1170 = vadd.f32 %v1145, 1e-12
    %v1171 = vadd.f32 %v1146, 1e-12
    %v1172 = vadd.f32 %v1147, 1e-12
    %v1173 = vadd.f32 %v1148, 1e-12
    %v1174 = vadd.f32 %v1149, 1e-12
    %v1175 = vadd.f32 %v1150, 1e-12
    %v1176 = vadd.f32 %v1151, 1e-12
    %v1177 = vadd.f32 %v1152, 1e-12
    %v1178 = vadd.f32 %v1153, 1e-12
    %v1179 = vadd.f32 %v1154, 1e-12
    %v1180 = vadd.f32 %v1155, 1e-12
    %v1181 = vadd.f32 %v1156, 1e-12
    %v1182 = vadd.f32 %v1157, 1e-12
    %v1183 = vadd.f32 %v1158, 1e-12
    %v1184 = vadd.f32 %v1159, 1e-12
    %v1185 = vadd.f32 %v1160, 1e-12
    %v1186 = vadd.f32 %v1161, 1e-12
    %v1187 = vadd.f32 %v1162, 1e-12
    %v1188 = vrsqrt.pop %v1163
    %v1189 = vrsqrt.pop %v1164
    %v1190 = vrsqrt.pop %v1165
    %v1191 = vrsqrt.pop %v1166
    %v1192 = vrsqrt.pop %v1167
    %v1193 = vrsqrt.pop %v1168
    %v1194 = vrsqrt.pop %v1169
    %v1195 = vrsqrt.pop %v1170
    %v1196 = vrsqrt.pop %v1171
    %v1197 = vrsqrt.pop %v1172
    %v1198 = vrsqrt.pop %v1173
    %v1199 = vrsqrt.pop %v1174
    %v1200 = vrsqrt.pop %v1175
    %v1201 = vrsqrt.pop %v1176
    %v1202 = vrsqrt.pop %v1177
    %v1203 = vrsqrt.pop %v1178
    %v1204 = vrsqrt.pop %v1179
    %v1205 = vrsqrt.pop %v1180
    %v1206 = vrsqrt.pop %v1181
    %v1207 = vrsqrt.pop %v1182
    %v1208 = vrsqrt.pop %v1183
    %v1209 = vrsqrt.pop %v1184
    %v1210 = vrsqrt.pop %v1185
    %v1211 = vrsqrt.pop %v1186
    %v1212 = vrsqrt.pop %v1187
    %v1213 = vmul.f32 %v1038, %v1188
    %v1214 = vmul.f32 %v1039, %v1189
    %v1215 = vmul.f32 %v1040, %v1190
    %v1216 = vmul.f32 %v1041, %v1191
    %v1217 = vmul.f32 %v1042, %v1192
    %v1218 = vmul.f32 %v1043, %v1193
    %v1219 = vmul.f32 %v1044, %v1194
    %v1220 = vmul.f32 %v1045, %v1195
    %v1221 = vmul.f32 %v1046, %v1196
    %v1222 = vmul.f32 %v1047, %v1197
    %v1223 = vmul.f32 %v1048, %v1198
    %v1224 = vmul.f32 %v1049, %v1199
    %v1225 = vmul.f32 %v1050, %v1200
    %v1226 = vmul.f32 %v1051, %v1201
    %v1227 = vmul.f32 %v1052, %v1202
    %v1228 = vmul.f32 %v1053, %v1203
    %v1229 = vmul.f32 %v1054, %v1204
    %v1230 = vmul.f32 %v1055, %v1205
    %v1231 = vmul.f32 %v1056, %v1206
    %v1232 = vmul.f32 %v1057, %v1207
    %v1233 = vmul.f32 %v1058, %v1208
    %v1234 = vmul.f32 %v1059, %v1209
    %v1235 = vmul.f32 %v1060, %v1210
    %v1236 = vmul.f32 %v1061, %v1211
    %v1237 = vmul.f32 %v1062, %v1212
    %v1238 = vld [vmem:[%s3] sm:$0x1]
    %v1240 = vlaneseq
    %v1241 = vshrl.u32 %v1240, 7
    %v1242 = vsub.s32 0, %v1241
    %v1243 = vrot.slane %v1238, %v1242
    %v1245 = vmul.f32 %v1213, %v1243
    %v1246 = vmul.f32 %v1214, %v1243
    %v1247 = vmul.f32 %v1215, %v1243
    %v1248 = vmul.f32 %v1216, %v1243
    %v1249 = vmul.f32 %v1217, %v1243
    %v1250 = vmul.f32 %v1218, %v1243
    %v1251 = vmul.f32 %v1219, %v1243
    %v1252 = vmul.f32 %v1220, %v1243
    %v1253 = vmul.f32 %v1221, %v1243
    %v1254 = vmul.f32 %v1222, %v1243
    %v1255 = vmul.f32 %v1223, %v1243
    %v1256 = vmul.f32 %v1224, %v1243
    %v1257 = vmul.f32 %v1225, %v1243
    %v1258 = vmul.f32 %v1226, %v1243
    %v1259 = vmul.f32 %v1227, %v1243
    %v1260 = vmul.f32 %v1228, %v1243
    %v1261 = vmul.f32 %v1229, %v1243
    %v1262 = vmul.f32 %v1230, %v1243
    %v1263 = vmul.f32 %v1231, %v1243
    %v1264 = vmul.f32 %v1232, %v1243
    %v1265 = vmul.f32 %v1233, %v1243
    %v1266 = vmul.f32 %v1234, %v1243
    %v1267 = vmul.f32 %v1235, %v1243
    %v1268 = vmul.f32 %v1236, %v1243
    %v1269 = vmul.f32 %v1237, %v1243
    %v1270 = vld [vmem:[%s4] sm:$0x1]
    %v1272 = vlaneseq
    %v1273 = vshrl.u32 %v1272, 7
    %v1274 = vsub.s32 0, %v1273
    %v1275 = vrot.slane %v1270, %v1274
    %v1277 = vadd.f32 %v1245, %v1275
    %v1278 = vadd.f32 %v1246, %v1275
    %v1279 = vadd.f32 %v1247, %v1275
    %v1280 = vadd.f32 %v1248, %v1275
    %v1281 = vadd.f32 %v1249, %v1275
    %v1282 = vadd.f32 %v1250, %v1275
    %v1283 = vadd.f32 %v1251, %v1275
    %v1284 = vadd.f32 %v1252, %v1275
    %v1285 = vadd.f32 %v1253, %v1275
    %v1286 = vadd.f32 %v1254, %v1275
    %v1287 = vadd.f32 %v1255, %v1275
    %v1288 = vadd.f32 %v1256, %v1275
    %v1289 = vadd.f32 %v1257, %v1275
    %v1290 = vadd.f32 %v1258, %v1275
    %v1291 = vadd.f32 %v1259, %v1275
    %v1292 = vadd.f32 %v1260, %v1275
    %v1293 = vadd.f32 %v1261, %v1275
    %v1294 = vadd.f32 %v1262, %v1275
    %v1295 = vadd.f32 %v1263, %v1275
    %v1296 = vadd.f32 %v1264, %v1275
    %v1297 = vadd.f32 %v1265, %v1275
    %v1298 = vadd.f32 %v1266, %v1275
    %v1299 = vadd.f32 %v1267, %v1275
    %v1300 = vadd.f32 %v1268, %v1275
    %v1301 = vadd.f32 %v1269, %v1275
    %v1302 = vpack.c.bf16 %v1278, %v1277
    %v1303 = vpack.c.bf16 %v1280, %v1279
    %v1304 = vpack.c.bf16 %v1282, %v1281
    %v1305 = vpack.c.bf16 %v1284, %v1283
    %v1306 = vpack.c.bf16 %v1286, %v1285
    %v1307 = vpack.c.bf16 %v1288, %v1287
    %v1308 = vpack.c.bf16 %v1290, %v1289
    %v1309 = vpack.c.bf16 %v1292, %v1291
    %v1310 = vpack.c.bf16 %v1294, %v1293
    %v1311 = vpack.c.bf16 %v1296, %v1295
    %v1312 = vpack.c.bf16 %v1298, %v1297
    %v1313 = vpack.c.bf16 %v1300, %v1299
    %v1314 = vpack.c.bf16 %v1301, %v1301
    %v1328 = vunpack.c.l.b16 %v1302
    %v1329 = vunpack.c.h.b16 %v1302
    %v1330 = vunpack.c.l.b16 %v1303
    %v1331 = vunpack.c.h.b16 %v1303
    %v1332 = vunpack.c.l.b16 %v1304
    %v1333 = vunpack.c.h.b16 %v1304
    %v1334 = vunpack.c.l.b16 %v1305
    %v1335 = vunpack.c.h.b16 %v1305
    %v1336 = vunpack.c.l.b16 %v1306
    %v1337 = vunpack.c.h.b16 %v1306
    %v1338 = vunpack.c.l.b16 %v1307
    %v1339 = vunpack.c.h.b16 %v1307
    %v1340 = vunpack.c.l.b16 %v1308
    %v1341 = vunpack.c.h.b16 %v1308
    %v1342 = vunpack.c.l.b16 %v1309
    %v1343 = vunpack.c.h.b16 %v1309
    %v1344 = vunpack.c.l.b16 %v1310
    %v1345 = vunpack.c.h.b16 %v1310
    %v1346 = vunpack.c.l.b16 %v1311
    %v1347 = vunpack.c.h.b16 %v1311
    %v1348 = vunpack.c.l.b16 %v1312
    %v1349 = vunpack.c.h.b16 %v1312
    %v1350 = vunpack.c.l.b16 %v1313
    %v1351 = vunpack.c.h.b16 %v1313
    %v1352 = vunpack.c.l.b16 %v1314
    %v1353 = vpack.c.b16 %v1328, %v1328
    %v1354 = vpack.c.b16 %v1329, %v1329
    %v1355 = vpack.c.b16 %v1330, %v1330
    %v1356 = vpack.c.b16 %v1331, %v1331
    %v1357 = vpack.c.b16 %v1332, %v1332
    %v1358 = vpack.c.b16 %v1333, %v1333
    %v1359 = vpack.c.b16 %v1334, %v1334
    %v1360 = vpack.c.b16 %v1335, %v1335
    %v1361 = vpack.c.b16 %v1336, %v1336
    %v1362 = vpack.c.b16 %v1337, %v1337
    %v1363 = vpack.c.b16 %v1338, %v1338
    %v1364 = vpack.c.b16 %v1339, %v1339
    %v1365 = vpack.c.b16 %v1340, %v1340
    %v1366 = vpack.c.b16 %v1341, %v1341
    %v1367 = vpack.c.b16 %v1342, %v1342
    %v1368 = vpack.c.b16 %v1343, %v1343
    %v1369 = vpack.c.b16 %v1344, %v1344
    %v1370 = vpack.c.b16 %v1345, %v1345
    %v1371 = vpack.c.b16 %v1346, %v1346
    %v1372 = vpack.c.b16 %v1347, %v1347
    %v1373 = vpack.c.b16 %v1348, %v1348
    %v1374 = vpack.c.b16 %v1349, %v1349
    %v1375 = vpack.c.b16 %v1350, %v1350
    %v1376 = vpack.c.b16 %v1351, %v1351
    %v1377 = vpack.c.b16 %v1352, %v1352
    %1403 = vst [vmem:[#allocation7] sm:$0xf] %v1353
    %1404 = vst [vmem:[#allocation7 + $0x4] sm:$0xf] %v1354
    %1405 = vst [vmem:[#allocation7 + $0x8] sm:$0xf] %v1355
    %1406 = vst [vmem:[#allocation7 + $0xc] sm:$0xf] %v1356
    %1407 = vst [vmem:[#allocation7 + $0x10] sm:$0xf] %v1357
    %1408 = vst [vmem:[#allocation7 + $0x14] sm:$0xf] %v1358
    %1409 = vst [vmem:[#allocation7 + $0x18] sm:$0xf] %v1359
    %1410 = vst [vmem:[#allocation7 + $0x1c] sm:$0xf] %v1360
    %1411 = vst [vmem:[#allocation7 + $0x20] sm:$0xf] %v1361
    %1412 = vst [vmem:[#allocation7 + $0x24] sm:$0xf] %v1362
    %1413 = vst [vmem:[#allocation7 + $0x28] sm:$0xf] %v1363
    %1414 = vst [vmem:[#allocation7 + $0x2c] sm:$0xf] %v1364
    %1415 = vst [vmem:[#allocation7 + $0x30] sm:$0xf] %v1365
    %1416 = vst [vmem:[#allocation7 + $0x34] sm:$0xf] %v1366
    %1417 = vst [vmem:[#allocation7 + $0x38] sm:$0xf] %v1367
    %1418 = vst [vmem:[#allocation7 + $0x3c] sm:$0xf] %v1368
    %1419 = vst [vmem:[#allocation7 + $0x40] sm:$0xf] %v1369
    %1420 = vst [vmem:[#allocation7 + $0x44] sm:$0xf] %v1370
    %1421 = vst [vmem:[#allocation7 + $0x48] sm:$0xf] %v1371
    %1422 = vst [vmem:[#allocation7 + $0x4c] sm:$0xf] %v1372
    %1423 = vst [vmem:[#allocation7 + $0x50] sm:$0xf] %v1373
    %1424 = vst [vmem:[#allocation7 + $0x54] sm:$0xf] %v1374
    %1425 = vst [vmem:[#allocation7 + $0x58] sm:$0xf] %v1375
    %1426 = vst [vmem:[#allocation7 + $0x5c] sm:$0xf] %v1376
    %1427 = vst [vmem:[#allocation7 + $0x60] sm:$0xf] %v1377
    // Predicated region
    $region30: #{tpu_custom_call.1} parent=1 // pred_check
      _
    $region31: #{tpu_custom_call.1} parent=1 // pred_check_branch
      %1429 = sbr.rel (0) target = $region33
    $region32: #{tpu_custom_call.1} parent=1 // pred_region
      %s1431 = ssub.s32 1600, 1600
      %1432 = vsyncadd [#allocation4], %s1431
      %s1433 = sshll.u32 [#allocation7], 4
      %s1434 = int_to_ptr.vmem [resolvable:$true] %s1433
      %1439 = dma.vmem_to_hbm [thread:$0]  %s1434, 1600, %s5, [#allocation4], 64, 64, 4
    $region33: #{tpu_custom_call.1} parent=1 // pred_fallthru
      _
    // Predicated region
    $region34: #{tpu_custom_call.1} parent=1 // pred_check
      _
    $region35: #{tpu_custom_call.1} parent=1 // pred_check_branch
      %1441 = sbr.rel (0) target = $region37
    $region36: #{tpu_custom_call.1} parent=1 // pred_region
      %1442 = dma.done [#allocation4], 1600
    $region37: #{tpu_custom_call.1} parent=1 // pred_fallthru
      _
    %1443 = vsyncpa [#allocation3], 1
    %1444 = vsyncpa [#allocation6], 1
    %1445 = vsyncpa [#allocation4], 1

</llo_original>
